<compile_context>
chip_gen: v7x
topology: tpu7x:2x2x1
jax: 0.10.0
libtpu: 0.0.40
codegen_flags: <defaults>
</compile_context>

<pallas_src>
import functools

import jax
import jax.numpy as jnp
from jax.experimental import pallas as pl
from jax.experimental.pallas import tpu as pltpu


# ---------------------------------------------------------------------------
# Fused kernel: QKV projection -> MHSA -> output projection (+ bias)
# ---------------------------------------------------------------------------
def _fused_attention_kernel(x_ref, wqkv_ref, wout_ref, bout_ref, o_ref,
                            qkv_scr, acc_scr, *, heads, dim_head, seq_len,
                            block_bp):
    # x_ref:    (rows, C)          rows = block_bp * seq_len
    # wqkv_ref: (C, 3*inner)       resident across the grid (scale pre-folded)
    # wout_ref: (inner, C)         resident across the grid
    # bout_ref: (1, C)
    # o_ref:    (rows, C)
    # qkv_scr:  (rows, 3*inner)    scratch in the input/compute dtype
    # acc_scr:  (rows, C)          f32 output-projection accumulator
    rows, C = x_ref.shape
    inner = heads * dim_head

    # --- QKV projection: one fat MXU matmul, f32 accumulation, stored in the
    # compute dtype so the attention matmuls feed the MXU natively (bf16). ---
    qkv_scr[...] = jnp.dot(
        x_ref[...], wqkv_ref[...],
        preferred_element_type=jnp.float32).astype(qkv_scr.dtype)

    # Accumulator starts at the broadcast output bias (hoisted, done once).
    acc_scr[...] = jnp.broadcast_to(bout_ref[...].astype(jnp.float32),
                                    (rows, C))

    # --- per-head attention + output-projection partial -------------------
    # Static Python loop keeps the head offsets compile-time constants
    # (aligned, known lane slices); the per-head read-modify-write of acc_scr
    # bounds vector-register live ranges across heads.
    for h in range(heads):
        off = h * dim_head
        q = qkv_scr[:, pl.ds(off, dim_head)]                 # (rows, D)
        k = qkv_scr[:, pl.ds(inner + off, dim_head)]         # (rows, D)
        v = qkv_scr[:, pl.ds(2 * inner + off, dim_head)]     # (rows, D)

        # Split the (sublane) row axis into (batch, seq); layout-free when
        # seq_len is a multiple of 8 (the block chooser keeps it so).
        qb = q.reshape(block_bp, seq_len, dim_head)
        kb = k.reshape(block_bp, seq_len, dim_head)
        vb = v.reshape(block_bp, seq_len, dim_head)

        # scores: q @ k^T without an explicit transpose (contract last dims);
        # the 1/sqrt(D) scale is already folded into the q columns of w_qkv.
        s = jnp.einsum("bnd,bmd->bnm", qb, kb,
                       preferred_element_type=jnp.float32)   # (b, N, N) f32
        s = s - jnp.max(s, axis=-1, keepdims=True)
        p = jnp.exp(s)
        denom = jnp.sum(p, axis=-1, keepdims=True)            # (b, N, 1) f32

        # Deferred normalization: normalize the (N, D) head output instead of
        # the (N, N) probabilities; reciprocal goes to the EUP slot.
        o_h = jnp.einsum("bnm,bmd->bnd", p.astype(vb.dtype), vb,
                         preferred_element_type=jnp.float32)  # (b, N, D) f32
        o_h = o_h * pl.reciprocal(denom, approx=True)

        # Per-head output-projection partial: aligned *sublane* slice of
        # w_out (no lane-sliced attn scratch store), accumulated in f32.
        w_h = wout_ref[pl.ds(off, dim_head), :]               # (D, C)
        acc_scr[...] += jnp.dot(
            o_h.reshape(rows, dim_head).astype(wout_ref.dtype), w_h,
            preferred_element_type=jnp.float32)

    o_ref[...] = acc_scr[...].astype(o_ref.dtype)


# ---------------------------------------------------------------------------
# Sizing helpers
# ---------------------------------------------------------------------------
def _vmem_capacity_bytes(default=64 * 1024 * 1024):
    try:
        info = pltpu.get_tpu_info()
        return int(getattr(info, "vmem_capacity_bytes", default))
    except Exception:  # non-TPU / interpret / older runtime
        return default


def _choose_block_bp(BP, N, C, inner, itemsize, vmem_budget):
    """Pick how many B*P rows each grid step handles.

    The working-set model includes the double-buffered input AND output tiles,
    the qkv scratch (compute dtype), the f32 output accumulator and the
    per-head f32 (N, N) scores (plus its exp temporary); the resident weights
    are subtracted from the budget.  We prefer >= 4 grid steps so that on v7x
    each TensorCore still runs >= 2 iterations and the BlockSpec pipeline can
    overlap DMA with compute.
    """
    per_row = (4 * N * C * itemsize        # 2x double-buffered in + out tiles
               + 3 * N * inner * itemsize  # qkv scratch (compute dtype)
               + N * C * 4                 # f32 accumulator
               + 2 * N * N * 4)            # per-head f32 scores + exp temp
    fixed = (C * 3 * inner + inner * C + C) * itemsize   # resident weights
    budget = max(vmem_budget - fixed, per_row)
    divisors = [d for d in range(1, BP + 1) if BP % d == 0]
    # keep the sublane split (rows -> batch, seq) on a tile boundary
    aligned = [d for d in divisors if (d * N) % 8 == 0 or d == BP] or divisors
    fitting = [d for d in aligned if d * per_row <= budget] or [min(aligned)]
    multi = [d for d in fitting if BP // d >= 4]
    return max(multi) if multi else max(fitting)


def _resident_spec(shape, single_buffer):
    """BlockSpec for a weight/bias that stays resident across the grid."""
    index_map = lambda i: (0,) * len(shape)
    if single_buffer:
        # Constant-index blocks are never re-DMA'd; single-buffer them to
        # reclaim VMEM (matters on v7x's 64 MiB/TC at real ViT dims).
        return pl.BlockSpec(shape, index_map, pipeline_mode=pl.Buffered(1))
    return pl.BlockSpec(shape, index_map)


# ---------------------------------------------------------------------------
# pallas_call wrapper
# ---------------------------------------------------------------------------
def pallas_fused_attention(x2, seq_len, w_qkv, w_out, b_out, heads, dim_head,
                           block_bp=None):
    # x2: (B*P*N, C); w_qkv: (C, 3*inner) with scale folded into q columns;
    # w_out: (inner, C); b_out: (C,)
    R, C = x2.shape
    N = seq_len
    assert R % N == 0
    BP = R // N
    inner = heads * dim_head
    assert w_qkv.shape == (C, 3 * inner)
    assert w_out.shape == (inner, C)

    itemsize = jnp.dtype(x2.dtype).itemsize
    vmem_phys = _vmem_capacity_bytes()
    vmem_limit = min(int(vmem_phys * 0.75), 100 * 1024 * 1024)

    if block_bp is None:
        block_bp = _choose_block_bp(BP, N, C, inner, itemsize,
                                    vmem_budget=int(vmem_limit * 0.7))
    assert BP % block_bp == 0
    rows = block_bp * N
    grid = (BP // block_bp,)

    # Single-buffer resident weights only when they are big enough to matter
    # (keeps the tiny-demo path on the plain, maximally portable BlockSpec).
    w_itemsize = jnp.dtype(w_qkv.dtype).itemsize
    weight_bytes = (C * 3 * inner + inner * C + C) * w_itemsize
    single_buffer_weights = weight_bytes > (2 * 1024 * 1024)

    kernel = functools.partial(
        _fused_attention_kernel, heads=heads, dim_head=dim_head,
        seq_len=N, block_bp=block_bp)

    return pl.pallas_call(
        kernel,
        out_shape=jax.ShapeDtypeStruct((R, C), x2.dtype),
        grid=grid,
        in_specs=[
            pl.BlockSpec((rows, C), lambda i: (i, 0)),
            _resident_spec((C, 3 * inner), single_buffer_weights),
            _resident_spec((inner, C), single_buffer_weights),
            _resident_spec((1, C), single_buffer_weights),
        ],
        out_specs=pl.BlockSpec((rows, C), lambda i: (i, 0)),
        scratch_shapes=[
            pltpu.VMEM((rows, 3 * inner), x2.dtype),   # qkv, compute dtype
            pltpu.VMEM((rows, C), jnp.float32),        # output accumulator
        ],
        compiler_params=pltpu.CompilerParams(
            dimension_semantics=("parallel",),
            vmem_limit_bytes=vmem_limit,
        ),
    )(x2, w_qkv, w_out, b_out.reshape(1, C))


# ---------------------------------------------------------------------------
# Module: parameters + forward
# ---------------------------------------------------------------------------
def init_attention_params(key, dim, heads, dim_head):
    """PyTorch-equivalent parameters, stored pre-transposed as (in, out)."""
    inner_dim = dim_head * heads
    k1, k2, k3 = jax.random.split(key, 3)
    # nn.Linear default init: U(-1/sqrt(fan_in), 1/sqrt(fan_in)).
    lim_qkv = 1.0 / (dim ** 0.5)
    lim_out = 1.0 / (inner_dim ** 0.5)
    w_qkv = jax.random.uniform(k1, (dim, inner_dim * 3), jnp.float32,
                               -lim_qkv, lim_qkv)
    w_out = jax.random.uniform(k2, (inner_dim, dim), jnp.float32,
                               -lim_out, lim_out)
    b_out = jax.random.uniform(k3, (dim,), jnp.float32, -lim_out, lim_out)
    return {"w_qkv": w_qkv, "w_out": w_out, "b_out": b_out}


def prepare_kernel_params(params, heads, dim_head):
    """One-time weight transform: fold 1/sqrt(dim_head) into the q columns."""
    inner = heads * dim_head
    scale = dim_head ** (-0.5)
    return {
        "w_qkv": params["w_qkv"].at[:, :inner].multiply(scale),
        "w_out": params["w_out"],
        "b_out": params["b_out"],
    }


def attention_forward(kernel_params, x, heads, dim_head):
    # x: (B, P, N, C).
    # NOTE: project_out is True for all heads>1 configs (as here).
    # TODO(synk): the nn.Identity branch (heads==1 and dim_head==dim) is not
    # exercised; it would simply skip the output projection.
    B, P, N, C = x.shape
    x2 = x.reshape(B * P * N, C)          # metadata-only merge, no HBM traffic
    out2 = pallas_fused_attention(
        x2, N, kernel_params["w_qkv"], kernel_params["w_out"],
        kernel_params["b_out"], heads, dim_head)
    return out2.reshape(B, P, N, C)


# ---------------------------------------------------------------------------
# Pure-JAX reference for validation (uses the *unscaled* PyTorch-style params)
# ---------------------------------------------------------------------------
def attention_ref(params, x, heads, dim_head):
    B, P, N, C = x.shape
    inner = heads * dim_head
    scale = dim_head ** (-0.5)
    hi = jax.lax.Precision.HIGHEST
    xf = x.astype(jnp.float32)
    qkv = jnp.einsum("bpnc,co->bpno", xf, params["w_qkv"].astype(jnp.float32),
                     precision=hi)
    q, k, v = jnp.split(qkv, 3, axis=-1)

    def sh(t):  # (B,P,N,H*D) -> (B,P,H,N,D)
        return jnp.transpose(t.reshape(B, P, N, heads, dim_head), (0, 1, 3, 2, 4))

    q, k, v = sh(q), sh(k), sh(v)
    dots = jnp.einsum("bphnd,bphmd->bphnm", q, k, precision=hi) * scale
    attn = jax.nn.softmax(dots, axis=-1)
    out = jnp.einsum("bphnm,bphmd->bphnd", attn, v, precision=hi)
    out = jnp.transpose(out, (0, 1, 3, 2, 4)).reshape(B, P, N, inner)
    return (jnp.einsum("bpni,ic->bpnc", out, params["w_out"].astype(jnp.float32),
                       precision=hi)
            + params["b_out"].astype(jnp.float32))


if __name__ == "__main__":
    B, P, N, DIM = 2, 2, 8, 32
    HEADS, DIM_HEAD = 4, 16

    key = jax.random.PRNGKey(0)
    kx, kp = jax.random.split(key)
    x = jax.random.normal(kx, (B, P, N, DIM), jnp.float32)
    params = init_attention_params(kp, DIM, HEADS, DIM_HEAD)
    kparams = prepare_kernel_params(params, HEADS, DIM_HEAD)

    fwd = jax.jit(functools.partial(attention_forward, heads=HEADS,
                                    dim_head=DIM_HEAD))

    # f32 path (f32 MXU operands, f32 softmax/accumulation; approx reciprocal)
    out = jax.block_until_ready(fwd(kparams, x))
    ref = attention_ref(params, x, HEADS, DIM_HEAD)
    assert out.shape == (B, P, N, DIM), out.shape
    assert jnp.allclose(out, ref, atol=2e-3, rtol=2e-3), float(
        jnp.max(jnp.abs(out - ref)))

    # bf16 path: bf16 MXU operands / bf16 qkv scratch, f32 softmax and
    # accumulation inside the kernel.  Compared against the f32 reference
    # with a bf16-appropriate tolerance.
    x_bf = x.astype(jnp.bfloat16)
    kparams_bf = jax.tree_util.tree_map(lambda t: t.astype(jnp.bfloat16),
                                        kparams)
    out_bf = jax.block_until_ready(fwd(kparams_bf, x_bf))
    assert float(jnp.max(jnp.abs(out_bf.astype(jnp.float32) - ref))) < 0.25

    print("KERNEL_OK")
</pallas_src>

<mosaic_0001>
module attributes {stable_mosaic.version = 11 : i64} {
  func.func @_fused_attention_kernel(%arg0: i32, %arg1: memref<8x32xf32, #tpu.memory_space<vmem>>, %arg2: memref<32x192xf32, #tpu.memory_space<vmem>>, %arg3: memref<64x32xf32, #tpu.memory_space<vmem>>, %arg4: memref<1x32xf32, #tpu.memory_space<vmem>>, %arg5: memref<8x32xf32, #tpu.memory_space<vmem>>, %arg6: memref<8x192xf32, #tpu.memory_space<vmem>>, %arg7: memref<8x32xf32, #tpu.memory_space<vmem>>) attributes {dimension_semantics = [#tpu.dimension_semantics<parallel>], iteration_bounds = array<i64: 4>, scalar_prefetch = 0 : i64, scratch_operands = 2 : i64, tpu.core_type = #tpu.core_type<tc>, window_params = [{transform_indices = @transform_0, window_bounds = array<i64: 8, 32>}, {pipeline_mode = #tpu.pipeline_mode<synchronous>, transform_indices = @transform_1, window_bounds = array<i64: 32, 192>}, {pipeline_mode = #tpu.pipeline_mode<synchronous>, transform_indices = @transform_2, window_bounds = array<i64: 64, 32>}, {pipeline_mode = #tpu.pipeline_mode<synchronous>, transform_indices = @transform_3, window_bounds = array<i64: 1, 32>}, {transform_indices = @transform_4, window_bounds = array<i64: 8, 32>}]} {
    %c0 = arith.constant 0 : index
    %c0_0 = arith.constant 0 : index
    %0 = vector.load %arg1[%c0, %c0_0] : memref<8x32xf32, #tpu.memory_space<vmem>>, vector<8x32xf32>
    %c0_1 = arith.constant 0 : index
    %c0_2 = arith.constant 0 : index
    %1 = vector.load %arg2[%c0_1, %c0_2] : memref<32x192xf32, #tpu.memory_space<vmem>>, vector<32x192xf32>
    %cst = arith.constant dense<0.000000e+00> : vector<8x192xf32>
    %2 = tpu.matmul %0, %1, %cst {dimension_numbers = #tpu.dot_dimension_numbers<[1], [0], [0], [1], [0, 0, 1, 1], [], []>} : vector<8x32xf32>, vector<32x192xf32>, vector<8x192xf32> -> vector<8x192xf32>
    %c0_3 = arith.constant 0 : index
    %c0_4 = arith.constant 0 : index
    %3 = vector.load %arg6[%c0_3, %c0_4] : memref<8x192xf32, #tpu.memory_space<vmem>>, vector<8x192xf32>
    tpu.vector_store %arg6[%c0_3, %c0_4], %2 {strides = array<i32>} : memref<8x192xf32, #tpu.memory_space<vmem>>, vector<8x192xf32>,
    %c0_5 = arith.constant 0 : index
    %c0_6 = arith.constant 0 : index
    %4 = vector.load %arg4[%c0_5, %c0_6] : memref<1x32xf32, #tpu.memory_space<vmem>>, vector<1x32xf32>
    %5 = vector.shape_cast %4 : vector<1x32xf32> to vector<1x32xf32>
    %6 = vector.broadcast %5 : vector<1x32xf32> to vector<8x32xf32>
    %c0_7 = arith.constant 0 : index
    %c0_8 = arith.constant 0 : index
    %7 = vector.load %arg7[%c0_7, %c0_8] : memref<8x32xf32, #tpu.memory_space<vmem>>, vector<8x32xf32>
    tpu.vector_store %arg7[%c0_7, %c0_8], %6 {strides = array<i32>} : memref<8x32xf32, #tpu.memory_space<vmem>>, vector<8x32xf32>,
    %c0_9 = arith.constant 0 : index
    %c0_10 = arith.constant 0 : index
    %8 = vector.load %arg6[%c0_9, %c0_10] : memref<8x192xf32, #tpu.memory_space<vmem>>, vector<8x16xf32>
    %c0_11 = arith.constant 0 : index
    %c64 = arith.constant 64 : index
    %9 = vector.load %arg6[%c0_11, %c64] : memref<8x192xf32, #tpu.memory_space<vmem>>, vector<8x16xf32>
    %c0_12 = arith.constant 0 : index
    %c128 = arith.constant 128 : index
    %10 = vector.load %arg6[%c0_12, %c128] : memref<8x192xf32, #tpu.memory_space<vmem>>, vector<8x16xf32>
    %11 = vector.shape_cast %8 : vector<8x16xf32> to vector<1x8x16xf32>
    %12 = vector.shape_cast %9 : vector<8x16xf32> to vector<1x8x16xf32>
    %13 = vector.shape_cast %10 : vector<8x16xf32> to vector<1x8x16xf32>
    "tpu.trace_start"() <{level = 10 : i32, message = "bnd,bmd->bnm"}> : () -> ()
    %cst_13 = arith.constant dense<0.000000e+00> : vector<1x8x8xf32>
    %14 = tpu.matmul %11, %12, %cst_13 {dimension_numbers = #tpu.dot_dimension_numbers<[2], [2], [1], [1], [0, 0, 0, 1, 1, 1], [0], [0]>} : vector<1x8x16xf32>, vector<1x8x16xf32>, vector<1x8x8xf32> -> vector<1x8x8xf32>
    "tpu.trace_stop"() : () -> ()
    %cst_14 = arith.constant dense<0xFF800000> : vector<1x8xf32>
    %15 = vector.multi_reduction <maximumf>, %14, %cst_14 [2] : vector<1x8x8xf32> to vector<1x8xf32>
    %16 = vector.shape_cast %15 : vector<1x8xf32> to vector<1x8x1xf32>
    %17 = vector.broadcast %16 : vector<1x8x1xf32> to vector<1x8x8xf32>
    %18 = arith.subf %14, %17 : vector<1x8x8xf32>
    %19 = math.exp %18 : vector<1x8x8xf32>
    %cst_15 = arith.constant dense<0.000000e+00> : vector<1x8xf32>
    %20 = vector.multi_reduction <add>, %19, %cst_15 [2] : vector<1x8x8xf32> to vector<1x8xf32>
    %21 = vector.shape_cast %20 : vector<1x8xf32> to vector<1x8x1xf32>
    "tpu.trace_start"() <{level = 10 : i32, message = "bnm,bmd->bnd"}> : () -> ()
    %cst_16 = arith.constant dense<0.000000e+00> : vector<1x8x16xf32>
    %22 = tpu.matmul %19, %13, %cst_16 {dimension_numbers = #tpu.dot_dimension_numbers<[2], [1], [1], [2], [0, 0, 0, 1, 1, 2], [0], [0]>} : vector<1x8x8xf32>, vector<1x8x16xf32>, vector<1x8x16xf32> -> vector<1x8x16xf32>
    "tpu.trace_stop"() : () -> ()
    %23 = tpu.reciprocal %21 {approx = true} : vector<1x8x1xf32> -> vector<1x8x1xf32>
    %24 = vector.broadcast %23 : vector<1x8x1xf32> to vector<1x8x16xf32>
    %25 = arith.mulf %22, %24 : vector<1x8x16xf32>
    %c0_17 = arith.constant 0 : index
    %c0_18 = arith.constant 0 : index
    %26 = vector.load %arg3[%c0_17, %c0_18] : memref<64x32xf32, #tpu.memory_space<vmem>>, vector<16x32xf32>
    %c0_19 = arith.constant 0 : index
    %c0_20 = arith.constant 0 : index
    %27 = vector.load %arg7[%c0_19, %c0_20] : memref<8x32xf32, #tpu.memory_space<vmem>>, vector<8x32xf32>
    %28 = vector.shape_cast %25 : vector<1x8x16xf32> to vector<8x16xf32>
    %cst_21 = arith.constant dense<0.000000e+00> : vector<8x32xf32>
    %29 = tpu.matmul %28, %26, %cst_21 {dimension_numbers = #tpu.dot_dimension_numbers<[1], [0], [0], [1], [0, 0, 1, 1], [], []>} : vector<8x16xf32>, vector<16x32xf32>, vector<8x32xf32> -> vector<8x32xf32>
    %30 = arith.addf %27, %29 : vector<8x32xf32>
    %c0_22 = arith.constant 0 : index
    %c0_23 = arith.constant 0 : index
    %31 = vector.load %arg7[%c0_22, %c0_23] : memref<8x32xf32, #tpu.memory_space<vmem>>, vector<8x32xf32>
    tpu.vector_store %arg7[%c0_22, %c0_23], %30 {strides = array<i32>} : memref<8x32xf32, #tpu.memory_space<vmem>>, vector<8x32xf32>,
    %c0_24 = arith.constant 0 : index
    %c16 = arith.constant 16 : index
    %32 = vector.load %arg6[%c0_24, %c16] : memref<8x192xf32, #tpu.memory_space<vmem>>, vector<8x16xf32>
    %c0_25 = arith.constant 0 : index
    %c80 = arith.constant 80 : index
    %33 = vector.load %arg6[%c0_25, %c80] : memref<8x192xf32, #tpu.memory_space<vmem>>, vector<8x16xf32>
    %c0_26 = arith.constant 0 : index
    %c144 = arith.constant 144 : index
    %34 = vector.load %arg6[%c0_26, %c144] : memref<8x192xf32, #tpu.memory_space<vmem>>, vector<8x16xf32>
    %35 = vector.shape_cast %32 : vector<8x16xf32> to vector<1x8x16xf32>
    %36 = vector.shape_cast %33 : vector<8x16xf32> to vector<1x8x16xf32>
    %37 = vector.shape_cast %34 : vector<8x16xf32> to vector<1x8x16xf32>
    "tpu.trace_start"() <{level = 10 : i32, message = "bnd,bmd->bnm"}> : () -> ()
    %cst_27 = arith.constant dense<0.000000e+00> : vector<1x8x8xf32>
    %38 = tpu.matmul %35, %36, %cst_27 {dimension_numbers = #tpu.dot_dimension_numbers<[2], [2], [1], [1], [0, 0, 0, 1, 1, 1], [0], [0]>} : vector<1x8x16xf32>, vector<1x8x16xf32>, vector<1x8x8xf32> -> vector<1x8x8xf32>
    "tpu.trace_stop"() : () -> ()
    %cst_28 = arith.constant dense<0xFF800000> : vector<1x8xf32>
    %39 = vector.multi_reduction <maximumf>, %38, %cst_28 [2] : vector<1x8x8xf32> to vector<1x8xf32>
    %40 = vector.shape_cast %39 : vector<1x8xf32> to vector<1x8x1xf32>
    %41 = vector.broadcast %40 : vector<1x8x1xf32> to vector<1x8x8xf32>
    %42 = arith.subf %38, %41 : vector<1x8x8xf32>
    %43 = math.exp %42 : vector<1x8x8xf32>
    %cst_29 = arith.constant dense<0.000000e+00> : vector<1x8xf32>
    %44 = vector.multi_reduction <add>, %43, %cst_29 [2] : vector<1x8x8xf32> to vector<1x8xf32>
    %45 = vector.shape_cast %44 : vector<1x8xf32> to vector<1x8x1xf32>
    "tpu.trace_start"() <{level = 10 : i32, message = "bnm,bmd->bnd"}> : () -> ()
    %cst_30 = arith.constant dense<0.000000e+00> : vector<1x8x16xf32>
    %46 = tpu.matmul %43, %37, %cst_30 {dimension_numbers = #tpu.dot_dimension_numbers<[2], [1], [1], [2], [0, 0, 0, 1, 1, 2], [0], [0]>} : vector<1x8x8xf32>, vector<1x8x16xf32>, vector<1x8x16xf32> -> vector<1x8x16xf32>
    "tpu.trace_stop"() : () -> ()
    %47 = tpu.reciprocal %45 {approx = true} : vector<1x8x1xf32> -> vector<1x8x1xf32>
    %48 = vector.broadcast %47 : vector<1x8x1xf32> to vector<1x8x16xf32>
    %49 = arith.mulf %46, %48 : vector<1x8x16xf32>
    %c16_31 = arith.constant 16 : index
    %c0_32 = arith.constant 0 : index
    %50 = vector.load %arg3[%c16_31, %c0_32] : memref<64x32xf32, #tpu.memory_space<vmem>>, vector<16x32xf32>
    %c0_33 = arith.constant 0 : index
    %c0_34 = arith.constant 0 : index
    %51 = vector.load %arg7[%c0_33, %c0_34] : memref<8x32xf32, #tpu.memory_space<vmem>>, vector<8x32xf32>
    %52 = vector.shape_cast %49 : vector<1x8x16xf32> to vector<8x16xf32>
    %cst_35 = arith.constant dense<0.000000e+00> : vector<8x32xf32>
    %53 = tpu.matmul %52, %50, %cst_35 {dimension_numbers = #tpu.dot_dimension_numbers<[1], [0], [0], [1], [0, 0, 1, 1], [], []>} : vector<8x16xf32>, vector<16x32xf32>, vector<8x32xf32> -> vector<8x32xf32>
    %54 = arith.addf %51, %53 : vector<8x32xf32>
    %c0_36 = arith.constant 0 : index
    %c0_37 = arith.constant 0 : index
    %55 = vector.load %arg7[%c0_36, %c0_37] : memref<8x32xf32, #tpu.memory_space<vmem>>, vector<8x32xf32>
    tpu.vector_store %arg7[%c0_36, %c0_37], %54 {strides = array<i32>} : memref<8x32xf32, #tpu.memory_space<vmem>>, vector<8x32xf32>,
    %c0_38 = arith.constant 0 : index
    %c32 = arith.constant 32 : index
    %56 = vector.load %arg6[%c0_38, %c32] : memref<8x192xf32, #tpu.memory_space<vmem>>, vector<8x16xf32>
    %c0_39 = arith.constant 0 : index
    %c96 = arith.constant 96 : index
    %57 = vector.load %arg6[%c0_39, %c96] : memref<8x192xf32, #tpu.memory_space<vmem>>, vector<8x16xf32>
    %c0_40 = arith.constant 0 : index
    %c160 = arith.constant 160 : index
    %58 = vector.load %arg6[%c0_40, %c160] : memref<8x192xf32, #tpu.memory_space<vmem>>, vector<8x16xf32>
    %59 = vector.shape_cast %56 : vector<8x16xf32> to vector<1x8x16xf32>
    %60 = vector.shape_cast %57 : vector<8x16xf32> to vector<1x8x16xf32>
    %61 = vector.shape_cast %58 : vector<8x16xf32> to vector<1x8x16xf32>
    "tpu.trace_start"() <{level = 10 : i32, message = "bnd,bmd->bnm"}> : () -> ()
    %cst_41 = arith.constant dense<0.000000e+00> : vector<1x8x8xf32>
    %62 = tpu.matmul %59, %60, %cst_41 {dimension_numbers = #tpu.dot_dimension_numbers<[2], [2], [1], [1], [0, 0, 0, 1, 1, 1], [0], [0]>} : vector<1x8x16xf32>, vector<1x8x16xf32>, vector<1x8x8xf32> -> vector<1x8x8xf32>
    "tpu.trace_stop"() : () -> ()
    %cst_42 = arith.constant dense<0xFF800000> : vector<1x8xf32>
    %63 = vector.multi_reduction <maximumf>, %62, %cst_42 [2] : vector<1x8x8xf32> to vector<1x8xf32>
    %64 = vector.shape_cast %63 : vector<1x8xf32> to vector<1x8x1xf32>
    %65 = vector.broadcast %64 : vector<1x8x1xf32> to vector<1x8x8xf32>
    %66 = arith.subf %62, %65 : vector<1x8x8xf32>
    %67 = math.exp %66 : vector<1x8x8xf32>
    %cst_43 = arith.constant dense<0.000000e+00> : vector<1x8xf32>
    %68 = vector.multi_reduction <add>, %67, %cst_43 [2] : vector<1x8x8xf32> to vector<1x8xf32>
    %69 = vector.shape_cast %68 : vector<1x8xf32> to vector<1x8x1xf32>
    "tpu.trace_start"() <{level = 10 : i32, message = "bnm,bmd->bnd"}> : () -> ()
    %cst_44 = arith.constant dense<0.000000e+00> : vector<1x8x16xf32>
    %70 = tpu.matmul %67, %61, %cst_44 {dimension_numbers = #tpu.dot_dimension_numbers<[2], [1], [1], [2], [0, 0, 0, 1, 1, 2], [0], [0]>} : vector<1x8x8xf32>, vector<1x8x16xf32>, vector<1x8x16xf32> -> vector<1x8x16xf32>
    "tpu.trace_stop"() : () -> ()
    %71 = tpu.reciprocal %69 {approx = true} : vector<1x8x1xf32> -> vector<1x8x1xf32>
    %72 = vector.broadcast %71 : vector<1x8x1xf32> to vector<1x8x16xf32>
    %73 = arith.mulf %70, %72 : vector<1x8x16xf32>
    %c32_45 = arith.constant 32 : index
    %c0_46 = arith.constant 0 : index
    %74 = vector.load %arg3[%c32_45, %c0_46] : memref<64x32xf32, #tpu.memory_space<vmem>>, vector<16x32xf32>
    %c0_47 = arith.constant 0 : index
    %c0_48 = arith.constant 0 : index
    %75 = vector.load %arg7[%c0_47, %c0_48] : memref<8x32xf32, #tpu.memory_space<vmem>>, vector<8x32xf32>
    %76 = vector.shape_cast %73 : vector<1x8x16xf32> to vector<8x16xf32>
    %cst_49 = arith.constant dense<0.000000e+00> : vector<8x32xf32>
    %77 = tpu.matmul %76, %74, %cst_49 {dimension_numbers = #tpu.dot_dimension_numbers<[1], [0], [0], [1], [0, 0, 1, 1], [], []>} : vector<8x16xf32>, vector<16x32xf32>, vector<8x32xf32> -> vector<8x32xf32>
    %78 = arith.addf %75, %77 : vector<8x32xf32>
    %c0_50 = arith.constant 0 : index
    %c0_51 = arith.constant 0 : index
    %79 = vector.load %arg7[%c0_50, %c0_51] : memref<8x32xf32, #tpu.memory_space<vmem>>, vector<8x32xf32>
    tpu.vector_store %arg7[%c0_50, %c0_51], %78 {strides = array<i32>} : memref<8x32xf32, #tpu.memory_space<vmem>>, vector<8x32xf32>,
    %c0_52 = arith.constant 0 : index
    %c48 = arith.constant 48 : index
    %80 = vector.load %arg6[%c0_52, %c48] : memref<8x192xf32, #tpu.memory_space<vmem>>, vector<8x16xf32>
    %c0_53 = arith.constant 0 : index
    %c112 = arith.constant 112 : index
    %81 = vector.load %arg6[%c0_53, %c112] : memref<8x192xf32, #tpu.memory_space<vmem>>, vector<8x16xf32>
    %c0_54 = arith.constant 0 : index
    %c176 = arith.constant 176 : index
    %82 = vector.load %arg6[%c0_54, %c176] : memref<8x192xf32, #tpu.memory_space<vmem>>, vector<8x16xf32>
    %83 = vector.shape_cast %80 : vector<8x16xf32> to vector<1x8x16xf32>
    %84 = vector.shape_cast %81 : vector<8x16xf32> to vector<1x8x16xf32>
    %85 = vector.shape_cast %82 : vector<8x16xf32> to vector<1x8x16xf32>
    "tpu.trace_start"() <{level = 10 : i32, message = "bnd,bmd->bnm"}> : () -> ()
    %cst_55 = arith.constant dense<0.000000e+00> : vector<1x8x8xf32>
    %86 = tpu.matmul %83, %84, %cst_55 {dimension_numbers = #tpu.dot_dimension_numbers<[2], [2], [1], [1], [0, 0, 0, 1, 1, 1], [0], [0]>} : vector<1x8x16xf32>, vector<1x8x16xf32>, vector<1x8x8xf32> -> vector<1x8x8xf32>
    "tpu.trace_stop"() : () -> ()
    %cst_56 = arith.constant dense<0xFF800000> : vector<1x8xf32>
    %87 = vector.multi_reduction <maximumf>, %86, %cst_56 [2] : vector<1x8x8xf32> to vector<1x8xf32>
    %88 = vector.shape_cast %87 : vector<1x8xf32> to vector<1x8x1xf32>
    %89 = vector.broadcast %88 : vector<1x8x1xf32> to vector<1x8x8xf32>
    %90 = arith.subf %86, %89 : vector<1x8x8xf32>
    %91 = math.exp %90 : vector<1x8x8xf32>
    %cst_57 = arith.constant dense<0.000000e+00> : vector<1x8xf32>
    %92 = vector.multi_reduction <add>, %91, %cst_57 [2] : vector<1x8x8xf32> to vector<1x8xf32>
    %93 = vector.shape_cast %92 : vector<1x8xf32> to vector<1x8x1xf32>
    "tpu.trace_start"() <{level = 10 : i32, message = "bnm,bmd->bnd"}> : () -> ()
    %cst_58 = arith.constant dense<0.000000e+00> : vector<1x8x16xf32>
    %94 = tpu.matmul %91, %85, %cst_58 {dimension_numbers = #tpu.dot_dimension_numbers<[2], [1], [1], [2], [0, 0, 0, 1, 1, 2], [0], [0]>} : vector<1x8x8xf32>, vector<1x8x16xf32>, vector<1x8x16xf32> -> vector<1x8x16xf32>
    "tpu.trace_stop"() : () -> ()
    %95 = tpu.reciprocal %93 {approx = true} : vector<1x8x1xf32> -> vector<1x8x1xf32>
    %96 = vector.broadcast %95 : vector<1x8x1xf32> to vector<1x8x16xf32>
    %97 = arith.mulf %94, %96 : vector<1x8x16xf32>
    %c48_59 = arith.constant 48 : index
    %c0_60 = arith.constant 0 : index
    %98 = vector.load %arg3[%c48_59, %c0_60] : memref<64x32xf32, #tpu.memory_space<vmem>>, vector<16x32xf32>
    %c0_61 = arith.constant 0 : index
    %c0_62 = arith.constant 0 : index
    %99 = vector.load %arg7[%c0_61, %c0_62] : memref<8x32xf32, #tpu.memory_space<vmem>>, vector<8x32xf32>
    %100 = vector.shape_cast %97 : vector<1x8x16xf32> to vector<8x16xf32>
    %cst_63 = arith.constant dense<0.000000e+00> : vector<8x32xf32>
    %101 = tpu.matmul %100, %98, %cst_63 {dimension_numbers = #tpu.dot_dimension_numbers<[1], [0], [0], [1], [0, 0, 1, 1], [], []>} : vector<8x16xf32>, vector<16x32xf32>, vector<8x32xf32> -> vector<8x32xf32>
    %102 = arith.addf %99, %101 : vector<8x32xf32>
    %c0_64 = arith.constant 0 : index
    %c0_65 = arith.constant 0 : index
    %103 = vector.load %arg7[%c0_64, %c0_65] : memref<8x32xf32, #tpu.memory_space<vmem>>, vector<8x32xf32>
    tpu.vector_store %arg7[%c0_64, %c0_65], %102 {strides = array<i32>} : memref<8x32xf32, #tpu.memory_space<vmem>>, vector<8x32xf32>,
    %c0_66 = arith.constant 0 : index
    %c0_67 = arith.constant 0 : index
    %104 = vector.load %arg7[%c0_66, %c0_67] : memref<8x32xf32, #tpu.memory_space<vmem>>, vector<8x32xf32>
    %c0_68 = arith.constant 0 : index
    %c0_69 = arith.constant 0 : index
    %105 = vector.load %arg5[%c0_68, %c0_69] : memref<8x32xf32, #tpu.memory_space<vmem>>, vector<8x32xf32>
    tpu.vector_store %arg5[%c0_68, %c0_69], %104 {strides = array<i32>} : memref<8x32xf32, #tpu.memory_space<vmem>>, vector<8x32xf32>,
    return
  }
  func.func @transform_0(%arg0: i32) -> (i32, i32) {
    %c0_i32 = arith.constant 0 : i32
    %c0_i32_0 = arith.constant 0 : i32
    return %arg0, %c0_i32 : i32, i32
  }
  func.func @transform_1(%arg0: i32) -> (i32, i32) {
    %c0_i32 = arith.constant 0 : i32
    %c0_i32_0 = arith.constant 0 : i32
    %c0_i32_1 = arith.constant 0 : i32
    return %c0_i32, %c0_i32_0 : i32, i32
  }
  func.func @transform_2(%arg0: i32) -> (i32, i32) {
    %c0_i32 = arith.constant 0 : i32
    %c0_i32_0 = arith.constant 0 : i32
    %c0_i32_1 = arith.constant 0 : i32
    return %c0_i32, %c0_i32_0 : i32, i32
  }
  func.func @transform_3(%arg0: i32) -> (i32, i32) {
    %c0_i32 = arith.constant 0 : i32
    %c0_i32_0 = arith.constant 0 : i32
    %c0_i32_1 = arith.constant 0 : i32
    return %c0_i32, %c0_i32_0 : i32, i32
  }
  func.func @transform_4(%arg0: i32) -> (i32, i32) {
    %c0_i32 = arith.constant 0 : i32
    %c0_i32_0 = arith.constant 0 : i32
    return %arg0, %c0_i32 : i32, i32
  }
}

</mosaic_0001>

<llo_original>
// kernel: attention_forward.1
$region0: #{attention_forward.1}
  #allocation0 [shape = 'u32[]', space=smem, size = 0x4, offset = 0x4, fixed_abs, tag = 'smem constant byte address 0x4 - core index']
  #allocation1 [shape = 'u32[144,128]{1,0:T(1,128)}', space=vmem, size = 0x12000, scoped, tag = 'internal scratch']
  #allocation2 [shape = 'f32[8,192]{1,0:T(8,128)}', space=vmem, size = 0x2000, scoped, tag = 'scratch operand']
  #allocation3 [shape = 'f32[8,32]{1,0:T(8,128)}', space=vmem, size = 0x1000, scoped, tag = 'scratch operand']
  %s0 = inlined_call_operand.vmem [shape: f32[32,32], index: 0, kind: input, shape index: {}]
  %s1 = inlined_call_operand.vmem [shape: f32[32,192], index: 1, kind: input, shape index: {}]
  %s2 = inlined_call_operand.vmem [shape: f32[64,32], index: 2, kind: input, shape index: {}]
  %s3 = inlined_call_operand.vmem [shape: f32[1,32], index: 3, kind: input, shape index: {}]
  %s4 = inlined_call_operand.hbm [shape: f32[32,32], index: 4, kind: output, shape index: {}]
  %s5 = sld [smem:[#allocation0]]
  $region49: #{attention_forward.1} parent=0
    _
  %s7 = ssub.s32 1, %s5
  %s8 = scalar_select 0, %s7, %s5
  $region1: #{attention_forward.1} parent=0
    #allocation4 [shape = 'u8[8192]{0}', space=vmem, size = 0x2000, scoped, tag = 'output window, operand 0']
    #allocation5 [shape = 's32[2]{0}', space=sflag, size = 0x8, scoped, tag = 'scoped memory for attention_forward.1']
    %9 = vsyncpa [#allocation5], 0
    %s10 = scalar_lea.sflag [#allocation5], 1
    %11 = vsyncpa %s10, 0
    loop: start=0, step=1, limit=6
    $region2: #{attention_forward.1} parent=1 // loop_pre_header
      _
    $region3: #{attention_forward.1} parent=1 // loop_header
      %s13 = sphi 0, %s17
      %p14 = scmp.ge.s32.totalorder %s13, 6
      %s23 = sphi 0, %s25
      %s26 = sphi 0, %s23
      %s27 = sphi 0, %s26
      %s43 = sphi 0, %s27
      %s47 = sphi 0, %s47
      %s49 = sphi 0, %s47
      %s50 = sphi 0, %s49
      %s64 = sphi 0, %s50
      %s68 = sphi 0, %s68
      %s70 = sphi 0, %s68
      %s71 = sphi 0, %s70
      %s85 = sphi 0, %s71
      %s89 = sphi 0, %s89
      %s91 = sphi 0, %s89
      %s92 = sphi 0, %s91
      %s106 = sphi 0, %s92
      %s112 = sphi 0, %s114
      %s115 = sphi 0, %s112
      %s116 = sphi 0, %s115
      %s132 = sphi 0, %s116
    $region4: #{attention_forward.1} parent=1 // loop_header_branch
      %16 = sbr.rel (%p14) target = $region8
    $region5: #{attention_forward.1} parent=1 // loop_body
      %s18 = ssub.s32 %s13, 1
      %s19 = ssub.s32 %s13, 2
      %s20 = sadd.s32 %s13, 1
      %s21 = ssub.s32 %s13, %s20
      %p22 = scmp.eq.s32.totalorder %s21, 0
      %s24 = sadd.s32 %s23, 1
      %s25 = scalar_select %p22, %s23, %s24
      %p28 = pneg %p22
      %p29 = scmp.eq.s32.totalorder %s13, 3
      %p30 = por %p28, %p29
      %p31 = scmp.ne.s32.totalorder %s23, %s26
      %p32 = scmp.eq.s32.totalorder %s13, 0
      %p33 = por %p31, %p32
      %p34 = scmp.ne.s32.totalorder %s23, %s26
      %p35 = scmp.eq.s32.totalorder %s18, 3
      %p36 = por %p34, %p35
      %p37 = scmp.ne.s32.totalorder %s26, %s27
      %p38 = scmp.eq.s32.totalorder %s18, 0
      %p39 = por %p37, %p38
      %p40 = scmp.ne.s32.totalorder %s26, %s27
      %p41 = scmp.eq.s32.totalorder %s19, 3
      %p42 = por %p40, %p41
      %p44 = scmp.ne.s32.totalorder %s27, %s43
      %p45 = scmp.eq.s32.totalorder %s19, 0
      %p46 = por %p44, %p45
      %s48 = sadd.s32 %s47, 1
      %p51 = scmp.eq.s32.totalorder %s13, 3
      %p52 = scmp.ne.s32.totalorder %s47, %s49
      %p53 = scmp.eq.s32.totalorder %s13, 0
      %p54 = por %p52, %p53
      %p55 = scmp.ne.s32.totalorder %s47, %s49
      %p56 = scmp.eq.s32.totalorder %s18, 3
      %p57 = por %p55, %p56
      %p58 = scmp.ne.s32.totalorder %s49, %s50
      %p59 = scmp.eq.s32.totalorder %s18, 0
      %p60 = por %p58, %p59
      %p61 = scmp.ne.s32.totalorder %s49, %s50
      %p62 = scmp.eq.s32.totalorder %s19, 3
      %p63 = por %p61, %p62
      %p65 = scmp.ne.s32.totalorder %s50, %s64
      %p66 = scmp.eq.s32.totalorder %s19, 0
      %p67 = por %p65, %p66
      %s69 = sadd.s32 %s68, 1
      %p72 = scmp.eq.s32.totalorder %s13, 3
      %p73 = scmp.ne.s32.totalorder %s68, %s70
      %p74 = scmp.eq.s32.totalorder %s13, 0
      %p75 = por %p73, %p74
      %p76 = scmp.ne.s32.totalorder %s68, %s70
      %p77 = scmp.eq.s32.totalorder %s18, 3
      %p78 = por %p76, %p77
      %p79 = scmp.ne.s32.totalorder %s70, %s71
      %p80 = scmp.eq.s32.totalorder %s18, 0
      %p81 = por %p79, %p80
      %p82 = scmp.ne.s32.totalorder %s70, %s71
      %p83 = scmp.eq.s32.totalorder %s19, 3
      %p84 = por %p82, %p83
      %p86 = scmp.ne.s32.totalorder %s71, %s85
      %p87 = scmp.eq.s32.totalorder %s19, 0
      %p88 = por %p86, %p87
      %s90 = sadd.s32 %s89, 1
      %p93 = scmp.eq.s32.totalorder %s13, 3
      %p94 = scmp.ne.s32.totalorder %s89, %s91
      %p95 = scmp.eq.s32.totalorder %s13, 0
      %p96 = por %p94, %p95
      %p97 = scmp.ne.s32.totalorder %s89, %s91
      %p98 = scmp.eq.s32.totalorder %s18, 3
      %p99 = por %p97, %p98
      %p100 = scmp.ne.s32.totalorder %s91, %s92
      %p101 = scmp.eq.s32.totalorder %s18, 0
      %p102 = por %p100, %p101
      %p103 = scmp.ne.s32.totalorder %s91, %s92
      %p104 = scmp.eq.s32.totalorder %s19, 3
      %p105 = por %p103, %p104
      %p107 = scmp.ne.s32.totalorder %s92, %s106
      %p108 = scmp.eq.s32.totalorder %s19, 0
      %p109 = por %p107, %p108
      %s110 = ssub.s32 %s13, %s20
      %p111 = scmp.eq.s32.totalorder %s110, 0
      %s113 = sadd.s32 %s112, 1
      %s114 = scalar_select %p111, %s112, %s113
      %p117 = pneg %p111
      %p118 = scmp.eq.s32.totalorder %s13, 3
      %p119 = por %p117, %p118
      %p120 = scmp.ne.s32.totalorder %s112, %s115
      %p121 = scmp.eq.s32.totalorder %s13, 0
      %p122 = por %p120, %p121
      %p123 = scmp.ne.s32.totalorder %s112, %s115
      %p124 = scmp.eq.s32.totalorder %s18, 3
      %p125 = por %p123, %p124
      %p126 = scmp.ne.s32.totalorder %s115, %s116
      %p127 = scmp.eq.s32.totalorder %s18, 0
      %p128 = por %p126, %p127
      %p129 = scmp.ne.s32.totalorder %s115, %s116
      %p130 = scmp.eq.s32.totalorder %s19, 3
      %p131 = por %p129, %p130
      %p133 = scmp.ne.s32.totalorder %s116, %s132
      %p134 = scmp.eq.s32.totalorder %s19, 0
      %p135 = por %p133, %p134
      %p136 = scmp.le.s32.totalorder 1, %s13
      %p137 = scmp.lt.s32.totalorder %s13, 5
      %p138 = pnand %p136, %p137
      %p139 = pneg %p138
      // Predicated region
      $region9: #{attention_forward.1} parent=5 // pred_check
        _
      $region10: #{attention_forward.1} parent=5 // pred_check_branch
        %141 = sbr.rel (%p138) target = $region12
      $region11: #{attention_forward.1} parent=5 // pred_region
        %s142 = ssub.s32 %s13, 1
        // Predicated region
        $region13: #{attention_forward.1} parent=11 // pred_check
          %p143 = pneg %p60
        $region14: #{attention_forward.1} parent=11 // pred_check_branch
          %145 = sbr.rel (%p143) target = $region16
        $region15: #{attention_forward.1} parent=11 // pred_region
          _
        $region16: #{attention_forward.1} parent=11 // pred_fallthru
          _
        // Predicated region
        $region17: #{attention_forward.1} parent=11 // pred_check
          %p146 = pneg %p81
        $region18: #{attention_forward.1} parent=11 // pred_check_branch
          %148 = sbr.rel (%p146) target = $region20
        $region19: #{attention_forward.1} parent=11 // pred_region
          _
        $region20: #{attention_forward.1} parent=11 // pred_fallthru
          _
        // Predicated region
        $region21: #{attention_forward.1} parent=11 // pred_check
          %p149 = pneg %p102
        $region22: #{attention_forward.1} parent=11 // pred_check_branch
          %151 = sbr.rel (%p149) target = $region24
        $region23: #{attention_forward.1} parent=11 // pred_region
          _
        $region24: #{attention_forward.1} parent=11 // pred_fallthru
          _
      $region12: #{attention_forward.1} parent=5 // pred_fallthru
        _
      %p152 = scmp.lt.s32.totalorder %s13, 4
      // Predicated region
      $region25: #{attention_forward.1} parent=5 // pred_check
        %p153 = pneg %p152
      $region26: #{attention_forward.1} parent=5 // pred_check_branch
        %155 = sbr.rel (%p153) target = $region28
      $region27: #{attention_forward.1} parent=5 // pred_region
        // Predicated region
        $region29: #{attention_forward.1} parent=27 // pred_check
          %p156 = pneg %p33
        $region30: #{attention_forward.1} parent=27 // pred_check_branch
          %158 = sbr.rel (%p156) target = $region32
        $region31: #{attention_forward.1} parent=27 // pred_region
          %p159 = scmp.lt.s32.totalorder %s13, 3
          %s160 = scalar_select %p159, %s13, 3
          %s161 = smul.addr %s160, 8
          %s162 = scalar_lea.vmem %s0, %s161
        $region32: #{attention_forward.1} parent=27 // pred_fallthru
          _
      $region28: #{attention_forward.1} parent=5 // pred_fallthru
        _
      %p163 = scmp.le.s32.totalorder 1, %s13
      %p164 = scmp.lt.s32.totalorder %s13, 5
      %p165 = pnand %p163, %p164
      %p166 = pneg %p165
      // Predicated region
      $region33: #{attention_forward.1} parent=5 // pred_check
        _
      $region34: #{attention_forward.1} parent=5 // pred_check_branch
        %168 = sbr.rel (%p165) target = $region36
      $region35: #{attention_forward.1} parent=5 // pred_region
        %s169 = ssub.s32 %s13, 1
        %p170 = scmp.lt.s32.totalorder %s18, 3
        %s171 = scalar_select %p170, %s18, 3
        %s172 = smul.addr %s171, 8
        %s173 = scalar_lea.vmem %s0, %s172
        %p174 = pneg %p39
        %p175 = pneg %p36
        %p176 = pneg %p60
        %p177 = pneg %p57
        %p178 = pneg %p81
        %p179 = pneg %p78
        %p180 = pneg %p102
        %p181 = pneg %p99
        %p182 = pneg %p128
        %p183 = pneg %p125
        %s184 = sand.u32 %s115, 1
        %s185 = scalar_lea.sflag [#allocation5], %s184
        %s186 = sand.u32 %s115, 1
        %s187 = smul.addr %s186, 8
        %s188 = scalar_lea.vmem [#allocation4], %s187
        %p189 = scmp.lt.s32.totalorder %s18, 3
        %s190 = scalar_select %p189, %s18, 3
        %s191 = smul.addr %s190, 8
        %s192 = scalar_lea.vmem %s0, %s191
        %v193 = vld [vmem:[%s192] sm:$0xff]
        %v194 = vld [vmem:[%s1] sm:$0xff]
        %v195 = vld [vmem:[%s1 + $0x8] sm:$0xff]
        %v196 = vld [vmem:[%s1 + $0x10] sm:$0xff]
        %v197 = vld [vmem:[%s1 + $0x18] sm:$0xff]
        %v198 = vld [vmem:[%s1 + $0x20] sm:$0xff]
        %v199 = vld [vmem:[%s1 + $0x28] sm:$0xff]
        %v200 = vld [vmem:[%s1 + $0x30] sm:$0xff]
        %v201 = vld [vmem:[%s1 + $0x38] sm:$0xff]
        %vm202 = vcmask 261120
        %v204 = vsel %vm202, %v193, 0
        %206 = vmatprep.subr.mxu0 %v195
        %207 = vmatpush1.msra.mxu0 %v194
        %208 = vmatprep.subr.mxu0 %v197
        %209 = vmatpush1.msra.mxu0 %v196
        %210 = vmatprep.subr.mxu0 %v199
        %211 = vmatpush1.msra.mxu0 %v198
        %212 = vmatprep.subr.mxu0 %v201
        %213 = vmatpush1.msra.mxu0 %v200
        %214 = vmatprep.subr.mxu0 0.0
        %215 = vmatpush1.msra.mxu0 0.0
        %216 = vmatprep.subr.mxu0 0.0
        %217 = vmatpush1.msra.mxu0 0.0
        %218 = vmatprep.subr.mxu0 0.0
        %219 = vmatpush1.msra.mxu0 0.0
        %220 = vmatprep.subr.mxu0 0.0
        %221 = vmatpush1.msra.mxu0 0.0
        %222 = vmatprep.subr.mxu0 0.0
        %223 = vmatpush1.msra.mxu0 0.0
        %224 = vmatprep.subr.mxu0 0.0
        %225 = vmatpush1.msra.mxu0 0.0
        %226 = vmatprep.subr.mxu0 0.0
        %227 = vmatpush1.msra.mxu0 0.0
        %228 = vmatprep.subr.mxu0 0.0
        %229 = vmatpush1.msra.mxu0 0.0
        %230 = vmatprep.subr.mxu0 0.0
        %231 = vmatpush1.msra.mxu0 0.0
        %232 = vmatprep.subr.mxu0 0.0
        %233 = vmatpush1.msra.mxu0 0.0
        %234 = vmatprep.subr.mxu0 0.0
        %235 = vmatpush1.msra.mxu0 0.0
        %236 = vmatprep.subr.mxu0 0.0
        %237 = vmatpush1.msra.mxu0 0.0
        %238 = vmatprep.subr.mxu0 0.0
        %239 = vmatpush1.msra.mxu0 0.0
        %240 = vmatprep.subr.mxu0 0.0
        %241 = vmatpush1.msra.mxu0 0.0
        %242 = vmatprep.subr.mxu0 0.0
        %243 = vmatpush1.msra.mxu0 0.0
        %244 = vmatprep.subr.mxu0 0.0
        %245 = vmatpush1.msra.mxu0 0.0
        %246 = vmatprep.subr.mxu0 0.0
        %247 = vmatpush1.msra.mxu0 0.0
        %248 = vmatprep.subr.mxu0 0.0
        %249 = vmatpush1.msra.mxu0 0.0
        %250 = vmatprep.subr.mxu0 0.0
        %251 = vmatpush1.msra.mxu0 0.0
        %252 = vmatprep.subr.mxu0 0.0
        %253 = vmatpush1.msra.mxu0 0.0
        %254 = vmatprep.subr.mxu0 0.0
        %255 = vmatpush1.msra.mxu0 0.0
        %256 = vmatprep.subr.mxu0 0.0
        %257 = vmatpush1.msra.mxu0 0.0
        %258 = vmatprep.subr.mxu0 0.0
        %259 = vmatpush1.msra.mxu0 0.0
        %260 = vmatprep.subr.mxu0 0.0
        %261 = vmatpush1.msra.mxu0 0.0
        %262 = vmatprep.subr.mxu0 0.0
        %263 = vmatpush1.msra.mxu0 0.0
        %264 = vmatprep.subr.mxu0 0.0
        %265 = vmatpush1.msra.mxu0 0.0
        %266 = vmatprep.subr.mxu0 0.0
        %267 = vmatpush1.msra.mxu0 0.0
        %268 = vmatprep.subr.mxu0 0.0
        %269 = vmatpush1.msra.mxu0 0.0
        %270 = vmatprep.mubr.f32.mxu0 0.0
        %271 = vmatmul.mubr.f32.gmra.mrb[0].mxu0 %v204
        %v272 = vpop.f32.mrb[0].mxu0
        %v273 = vadd.f32 0.0, %v272
        %v274 = vpop.f32.mrb[0].mxu0
        %v275 = vadd.f32 0.0, %v274
        %276 = vdwg.mxu0
        %277 = vst [vmem:[#allocation2] sm:$0xff] %v273
        %vm278 = vcmask 523264
        %279 = vst.msk [vmem:[#allocation2 + $0x8] sm:$0xff] %vm278, %v275
        %v280 = vld [vmem:[%s3] sm:$0x1]
        %v282 = vlaneseq
        %v283 = vshrl.u32 %v282, 7
        %v284 = vsub.s32 0, %v283
        %v285 = vrot.slane %v280, %v284
        %287 = vst.msk [vmem:[#allocation3] sm:$0xff] %vm202, %v285
        %v288 = vld [vmem:[#allocation2] sm:$0xff]
        %v289 = vld [vmem:[#allocation2 + $0x8] sm:$0xff]
        %291 = vrot.lane.b32.xlu0 %v288, 64
        %v292 = vpop.permute.xlu0 %291
        %vm293 = vcmask 130048
        %v294 = vsel %vm293, %v288, 0
        %v296 = vsel %vm293, %v292, 0
        %298 = vmatprep.subr.mxu0 0.0
        %299 = vmatpush1.xpose.msra.mxu0 %v296
        %300 = vmatprep.subr.mxu0 0.0
        %301 = vmatpush1.xpose.msra.mxu0 0.0
        %302 = vmatprep.subr.mxu0 0.0
        %303 = vmatpush1.xpose.msra.mxu0 0.0
        %304 = vmatprep.subr.mxu0 0.0
        %305 = vmatpush1.xpose.msra.mxu0 0.0
        %306 = vmatprep.subr.mxu0 0.0
        %307 = vmatpush1.xpose.msra.mxu0 0.0
        %308 = vmatprep.subr.mxu0 0.0
        %309 = vmatpush1.xpose.msra.mxu0 0.0
        %310 = vmatprep.subr.mxu0 0.0
        %311 = vmatpush1.xpose.msra.mxu0 0.0
        %312 = vmatprep.subr.mxu0 0.0
        %313 = vmatpush1.xpose.msra.mxu0 0.0
        %314 = vmatprep.subr.mxu0 0.0
        %315 = vmatpush1.xpose.msra.mxu0 0.0
        %316 = vmatprep.subr.mxu0 0.0
        %317 = vmatpush1.xpose.msra.mxu0 0.0
        %318 = vmatprep.subr.mxu0 0.0
        %319 = vmatpush1.xpose.msra.mxu0 0.0
        %320 = vmatprep.subr.mxu0 0.0
        %321 = vmatpush1.xpose.msra.mxu0 0.0
        %322 = vmatprep.subr.mxu0 0.0
        %323 = vmatpush1.xpose.msra.mxu0 0.0
        %324 = vmatprep.subr.mxu0 0.0
        %325 = vmatpush1.xpose.msra.mxu0 0.0
        %326 = vmatprep.subr.mxu0 0.0
        %327 = vmatpush1.xpose.msra.mxu0 0.0
        %328 = vmatprep.subr.mxu0 0.0
        %329 = vmatpush1.xpose.msra.mxu0 0.0
        %330 = vmatprep.subr.mxu0 0.0
        %331 = vmatpush1.xpose.msra.mxu0 0.0
        %332 = vmatprep.subr.mxu0 0.0
        %333 = vmatpush1.xpose.msra.mxu0 0.0
        %334 = vmatprep.subr.mxu0 0.0
        %335 = vmatpush1.xpose.msra.mxu0 0.0
        %336 = vmatprep.subr.mxu0 0.0
        %337 = vmatpush1.xpose.msra.mxu0 0.0
        %338 = vmatprep.subr.mxu0 0.0
        %339 = vmatpush1.xpose.msra.mxu0 0.0
        %340 = vmatprep.subr.mxu0 0.0
        %341 = vmatpush1.xpose.msra.mxu0 0.0
        %342 = vmatprep.subr.mxu0 0.0
        %343 = vmatpush1.xpose.msra.mxu0 0.0
        %344 = vmatprep.subr.mxu0 0.0
        %345 = vmatpush1.xpose.msra.mxu0 0.0
        %346 = vmatprep.subr.mxu0 0.0
        %347 = vmatpush1.xpose.msra.mxu0 0.0
        %348 = vmatprep.subr.mxu0 0.0
        %349 = vmatpush1.xpose.msra.mxu0 0.0
        %350 = vmatprep.subr.mxu0 0.0
        %351 = vmatpush1.xpose.msra.mxu0 0.0
        %352 = vmatprep.subr.mxu0 0.0
        %353 = vmatpush1.xpose.msra.mxu0 0.0
        %354 = vmatprep.subr.mxu0 0.0
        %355 = vmatpush1.xpose.msra.mxu0 0.0
        %356 = vmatprep.subr.mxu0 0.0
        %357 = vmatpush1.xpose.msra.mxu0 0.0
        %358 = vmatprep.subr.mxu0 0.0
        %359 = vmatpush1.xpose.msra.mxu0 0.0
        %360 = vmatprep.subr.mxu0 0.0
        %361 = vmatpush1.xpose.msra.mxu0 0.0
        %362 = vmatprep.mubr.f32.mxu0 0.0
        %363 = vmatmul.mubr.f32.gmra.mrb[0].mxu0 %v294
        %v364 = vpop.f32.mrb[0].mxu0
        %v365 = vadd.f32 0.0, %v364
        %v366 = vpop.f32.mrb[0].mxu0
        %367 = vdwg.mxu0
        %vm368 = vcmask 64512
        %v369 = vsel %vm368, %v365, -inf
        %370 = vmax.xlane.f32.xlu0 %v369
        %v371 = vpop.xlane.xlu0 %370
        %v372 = vsub.f32 %v365, %v371
        %v373 = vmul.f32 %v372, 1.442695
        %v374 = vpow.pop %v373
        %v375 = vsel %vm368, %v374, 0.0
        %376 = vadd.xlane.f32.xlu0 %v375
        %v377 = vpop.xlane.xlu0 %376
        %v379 = vsel %vm368, %v374, 0
        %381 = vmatprep.subr.mxu0 0.0
        %382 = vmatpush1.msra.mxu0 %v289
        %383 = vmatprep.subr.mxu0 0.0
        %384 = vmatpush1.msra.mxu0 0.0
        %385 = vmatprep.subr.mxu0 0.0
        %386 = vmatpush1.msra.mxu0 0.0
        %387 = vmatprep.subr.mxu0 0.0
        %388 = vmatpush1.msra.mxu0 0.0
        %389 = vmatprep.subr.mxu0 0.0
        %390 = vmatpush1.msra.mxu0 0.0
        %391 = vmatprep.subr.mxu0 0.0
        %392 = vmatpush1.msra.mxu0 0.0
        %393 = vmatprep.subr.mxu0 0.0
        %394 = vmatpush1.msra.mxu0 0.0
        %395 = vmatprep.subr.mxu0 0.0
        %396 = vmatpush1.msra.mxu0 0.0
        %397 = vmatprep.subr.mxu0 0.0
        %398 = vmatpush1.msra.mxu0 0.0
        %399 = vmatprep.subr.mxu0 0.0
        %400 = vmatpush1.msra.mxu0 0.0
        %401 = vmatprep.subr.mxu0 0.0
        %402 = vmatpush1.msra.mxu0 0.0
        %403 = vmatprep.subr.mxu0 0.0
        %404 = vmatpush1.msra.mxu0 0.0
        %405 = vmatprep.subr.mxu0 0.0
        %406 = vmatpush1.msra.mxu0 0.0
        %407 = vmatprep.subr.mxu0 0.0
        %408 = vmatpush1.msra.mxu0 0.0
        %409 = vmatprep.subr.mxu0 0.0
        %410 = vmatpush1.msra.mxu0 0.0
        %411 = vmatprep.subr.mxu0 0.0
        %412 = vmatpush1.msra.mxu0 0.0
        %413 = vmatprep.subr.mxu0 0.0
        %414 = vmatpush1.msra.mxu0 0.0
        %415 = vmatprep.subr.mxu0 0.0
        %416 = vmatpush1.msra.mxu0 0.0
        %417 = vmatprep.subr.mxu0 0.0
        %418 = vmatpush1.msra.mxu0 0.0
        %419 = vmatprep.subr.mxu0 0.0
        %420 = vmatpush1.msra.mxu0 0.0
        %421 = vmatprep.subr.mxu0 0.0
        %422 = vmatpush1.msra.mxu0 0.0
        %423 = vmatprep.subr.mxu0 0.0
        %424 = vmatpush1.msra.mxu0 0.0
        %425 = vmatprep.subr.mxu0 0.0
        %426 = vmatpush1.msra.mxu0 0.0
        %427 = vmatprep.subr.mxu0 0.0
        %428 = vmatpush1.msra.mxu0 0.0
        %429 = vmatprep.subr.mxu0 0.0
        %430 = vmatpush1.msra.mxu0 0.0
        %431 = vmatprep.subr.mxu0 0.0
        %432 = vmatpush1.msra.mxu0 0.0
        %433 = vmatprep.subr.mxu0 0.0
        %434 = vmatpush1.msra.mxu0 0.0
        %435 = vmatprep.subr.mxu0 0.0
        %436 = vmatpush1.msra.mxu0 0.0
        %437 = vmatprep.subr.mxu0 0.0
        %438 = vmatpush1.msra.mxu0 0.0
        %439 = vmatprep.subr.mxu0 0.0
        %440 = vmatpush1.msra.mxu0 0.0
        %441 = vmatprep.subr.mxu0 0.0
        %442 = vmatpush1.msra.mxu0 0.0
        %443 = vmatprep.subr.mxu0 0.0
        %444 = vmatpush1.msra.mxu0 0.0
        %445 = vmatprep.mubr.f32.mxu0 0.0
        %446 = vmatmul.mubr.f32.gmra.mrb[0].mxu0 %v379
        %v447 = vpop.f32.mrb[0].mxu0
        %v448 = vadd.f32 0.0, %v447
        %v449 = vpop.f32.mrb[0].mxu0
        %450 = vdwg.mxu0
        %v451 = vrcp.pop %v377
        %v452 = vmul.f32 %v448, %v451
        %v453 = vld [vmem:[%s2] sm:$0xff]
        %v454 = vld [vmem:[%s2 + $0x8] sm:$0xff]
        %v455 = vld [vmem:[#allocation3] sm:$0xff]
        %v457 = vsel %vm293, %v452, 0
        %459 = vmatprep.subr.mxu0 0.0
        %460 = vmatpush1.msra.mxu0 %v453
        %461 = vmatprep.subr.mxu0 0.0
        %462 = vmatpush1.msra.mxu0 %v454
        %463 = vmatprep.subr.mxu0 0.0
        %464 = vmatpush1.msra.mxu0 0.0
        %465 = vmatprep.subr.mxu0 0.0
        %466 = vmatpush1.msra.mxu0 0.0
        %467 = vmatprep.subr.mxu0 0.0
        %468 = vmatpush1.msra.mxu0 0.0
        %469 = vmatprep.subr.mxu0 0.0
        %470 = vmatpush1.msra.mxu0 0.0
        %471 = vmatprep.subr.mxu0 0.0
        %472 = vmatpush1.msra.mxu0 0.0
        %473 = vmatprep.subr.mxu0 0.0
        %474 = vmatpush1.msra.mxu0 0.0
        %475 = vmatprep.subr.mxu0 0.0
        %476 = vmatpush1.msra.mxu0 0.0
        %477 = vmatprep.subr.mxu0 0.0
        %478 = vmatpush1.msra.mxu0 0.0
        %479 = vmatprep.subr.mxu0 0.0
        %480 = vmatpush1.msra.mxu0 0.0
        %481 = vmatprep.subr.mxu0 0.0
        %482 = vmatpush1.msra.mxu0 0.0
        %483 = vmatprep.subr.mxu0 0.0
        %484 = vmatpush1.msra.mxu0 0.0
        %485 = vmatprep.subr.mxu0 0.0
        %486 = vmatpush1.msra.mxu0 0.0
        %487 = vmatprep.subr.mxu0 0.0
        %488 = vmatpush1.msra.mxu0 0.0
        %489 = vmatprep.subr.mxu0 0.0
        %490 = vmatpush1.msra.mxu0 0.0
        %491 = vmatprep.subr.mxu0 0.0
        %492 = vmatpush1.msra.mxu0 0.0
        %493 = vmatprep.subr.mxu0 0.0
        %494 = vmatpush1.msra.mxu0 0.0
        %495 = vmatprep.subr.mxu0 0.0
        %496 = vmatpush1.msra.mxu0 0.0
        %497 = vmatprep.subr.mxu0 0.0
        %498 = vmatpush1.msra.mxu0 0.0
        %499 = vmatprep.subr.mxu0 0.0
        %500 = vmatpush1.msra.mxu0 0.0
        %501 = vmatprep.subr.mxu0 0.0
        %502 = vmatpush1.msra.mxu0 0.0
        %503 = vmatprep.subr.mxu0 0.0
        %504 = vmatpush1.msra.mxu0 0.0
        %505 = vmatprep.subr.mxu0 0.0
        %506 = vmatpush1.msra.mxu0 0.0
        %507 = vmatprep.subr.mxu0 0.0
        %508 = vmatpush1.msra.mxu0 0.0
        %509 = vmatprep.subr.mxu0 0.0
        %510 = vmatpush1.msra.mxu0 0.0
        %511 = vmatprep.subr.mxu0 0.0
        %512 = vmatpush1.msra.mxu0 0.0
        %513 = vmatprep.subr.mxu0 0.0
        %514 = vmatpush1.msra.mxu0 0.0
        %515 = vmatprep.subr.mxu0 0.0
        %516 = vmatpush1.msra.mxu0 0.0
        %517 = vmatprep.subr.mxu0 0.0
        %518 = vmatpush1.msra.mxu0 0.0
        %519 = vmatprep.subr.mxu0 0.0
        %520 = vmatpush1.msra.mxu0 0.0
        %521 = vmatprep.subr.mxu0 0.0
        %522 = vmatpush1.msra.mxu0 0.0
        %523 = vmatprep.mubr.f32.mxu0 0.0
        %524 = vmatmul.mubr.f32.gmra.mrb[0].mxu0 %v457
        %v525 = vpop.f32.mrb[0].mxu0
        %v526 = vadd.f32 0.0, %v525
        %v527 = vpop.f32.mrb[0].mxu0
        %528 = vdwg.mxu0
        %v529 = vadd.f32 %v455, %v526
        %530 = vst.msk [vmem:[#allocation3] sm:$0xff] %vm202, %v529
        %v531 = vld [vmem:[#allocation2] sm:$0xff]
        %v532 = vld [vmem:[#allocation2 + $0x8] sm:$0xff]
        %534 = vrot.lane.b32.xlu0 %v531, 112
        %v535 = vpop.permute.xlu0 %534
        %536 = vrot.lane.b32.xlu0 %v531, 48
        %v537 = vpop.permute.xlu0 %536
        %v538 = vsel %vm293, %v535, 0
        %v540 = vsel %vm293, %v537, 0
        %542 = vmatprep.subr.mxu0 0.0
        %543 = vmatpush1.xpose.msra.mxu0 %v540
        %544 = vmatprep.subr.mxu0 0.0
        %545 = vmatpush1.xpose.msra.mxu0 0.0
        %546 = vmatprep.subr.mxu0 0.0
        %547 = vmatpush1.xpose.msra.mxu0 0.0
        %548 = vmatprep.subr.mxu0 0.0
        %549 = vmatpush1.xpose.msra.mxu0 0.0
        %550 = vmatprep.subr.mxu0 0.0
        %551 = vmatpush1.xpose.msra.mxu0 0.0
        %552 = vmatprep.subr.mxu0 0.0
        %553 = vmatpush1.xpose.msra.mxu0 0.0
        %554 = vmatprep.subr.mxu0 0.0
        %555 = vmatpush1.xpose.msra.mxu0 0.0
        %556 = vmatprep.subr.mxu0 0.0
        %557 = vmatpush1.xpose.msra.mxu0 0.0
        %558 = vmatprep.subr.mxu0 0.0
        %559 = vmatpush1.xpose.msra.mxu0 0.0
        %560 = vmatprep.subr.mxu0 0.0
        %561 = vmatpush1.xpose.msra.mxu0 0.0
        %562 = vmatprep.subr.mxu0 0.0
        %563 = vmatpush1.xpose.msra.mxu0 0.0
        %564 = vmatprep.subr.mxu0 0.0
        %565 = vmatpush1.xpose.msra.mxu0 0.0
        %566 = vmatprep.subr.mxu0 0.0
        %567 = vmatpush1.xpose.msra.mxu0 0.0
        %568 = vmatprep.subr.mxu0 0.0
        %569 = vmatpush1.xpose.msra.mxu0 0.0
        %570 = vmatprep.subr.mxu0 0.0
        %571 = vmatpush1.xpose.msra.mxu0 0.0
        %572 = vmatprep.subr.mxu0 0.0
        %573 = vmatpush1.xpose.msra.mxu0 0.0
        %574 = vmatprep.subr.mxu0 0.0
        %575 = vmatpush1.xpose.msra.mxu0 0.0
        %576 = vmatprep.subr.mxu0 0.0
        %577 = vmatpush1.xpose.msra.mxu0 0.0
        %578 = vmatprep.subr.mxu0 0.0
        %579 = vmatpush1.xpose.msra.mxu0 0.0
        %580 = vmatprep.subr.mxu0 0.0
        %581 = vmatpush1.xpose.msra.mxu0 0.0
        %582 = vmatprep.subr.mxu0 0.0
        %583 = vmatpush1.xpose.msra.mxu0 0.0
        %584 = vmatprep.subr.mxu0 0.0
        %585 = vmatpush1.xpose.msra.mxu0 0.0
        %586 = vmatprep.subr.mxu0 0.0
        %587 = vmatpush1.xpose.msra.mxu0 0.0
        %588 = vmatprep.subr.mxu0 0.0
        %589 = vmatpush1.xpose.msra.mxu0 0.0
        %590 = vmatprep.subr.mxu0 0.0
        %591 = vmatpush1.xpose.msra.mxu0 0.0
        %592 = vmatprep.subr.mxu0 0.0
        %593 = vmatpush1.xpose.msra.mxu0 0.0
        %594 = vmatprep.subr.mxu0 0.0
        %595 = vmatpush1.xpose.msra.mxu0 0.0
        %596 = vmatprep.subr.mxu0 0.0
        %597 = vmatpush1.xpose.msra.mxu0 0.0
        %598 = vmatprep.subr.mxu0 0.0
        %599 = vmatpush1.xpose.msra.mxu0 0.0
        %600 = vmatprep.subr.mxu0 0.0
        %601 = vmatpush1.xpose.msra.mxu0 0.0
        %602 = vmatprep.subr.mxu0 0.0
        %603 = vmatpush1.xpose.msra.mxu0 0.0
        %604 = vmatprep.subr.mxu0 0.0
        %605 = vmatpush1.xpose.msra.mxu0 0.0
        %606 = vmatprep.mubr.f32.mxu0 0.0
        %607 = vmatmul.mubr.f32.gmra.mrb[0].mxu0 %v538
        %v608 = vpop.f32.mrb[0].mxu0
        %v609 = vadd.f32 0.0, %v608
        %v610 = vpop.f32.mrb[0].mxu0
        %611 = vdwg.mxu0
        %v612 = vsel %vm368, %v609, -inf
        %613 = vmax.xlane.f32.xlu0 %v612
        %v614 = vpop.xlane.xlu0 %613
        %v615 = vsub.f32 %v609, %v614
        %v616 = vmul.f32 %v615, 1.442695
        %v617 = vpow.pop %v616
        %v618 = vsel %vm368, %v617, 0.0
        %619 = vadd.xlane.f32.xlu0 %v618
        %v620 = vpop.xlane.xlu0 %619
        %622 = vrot.lane.b32.xlu0 %v532, 112
        %v623 = vpop.permute.xlu0 %622
        %v626 = vsel %vm368, %v617, 0
        %628 = vmatprep.subr.mxu0 0.0
        %629 = vmatpush1.msra.mxu0 %v623
        %630 = vmatprep.subr.mxu0 0.0
        %631 = vmatpush1.msra.mxu0 0.0
        %632 = vmatprep.subr.mxu0 0.0
        %633 = vmatpush1.msra.mxu0 0.0
        %634 = vmatprep.subr.mxu0 0.0
        %635 = vmatpush1.msra.mxu0 0.0
        %636 = vmatprep.subr.mxu0 0.0
        %637 = vmatpush1.msra.mxu0 0.0
        %638 = vmatprep.subr.mxu0 0.0
        %639 = vmatpush1.msra.mxu0 0.0
        %640 = vmatprep.subr.mxu0 0.0
        %641 = vmatpush1.msra.mxu0 0.0
        %642 = vmatprep.subr.mxu0 0.0
        %643 = vmatpush1.msra.mxu0 0.0
        %644 = vmatprep.subr.mxu0 0.0
        %645 = vmatpush1.msra.mxu0 0.0
        %646 = vmatprep.subr.mxu0 0.0
        %647 = vmatpush1.msra.mxu0 0.0
        %648 = vmatprep.subr.mxu0 0.0
        %649 = vmatpush1.msra.mxu0 0.0
        %650 = vmatprep.subr.mxu0 0.0
        %651 = vmatpush1.msra.mxu0 0.0
        %652 = vmatprep.subr.mxu0 0.0
        %653 = vmatpush1.msra.mxu0 0.0
        %654 = vmatprep.subr.mxu0 0.0
        %655 = vmatpush1.msra.mxu0 0.0
        %656 = vmatprep.subr.mxu0 0.0
        %657 = vmatpush1.msra.mxu0 0.0
        %658 = vmatprep.subr.mxu0 0.0
        %659 = vmatpush1.msra.mxu0 0.0
        %660 = vmatprep.subr.mxu0 0.0
        %661 = vmatpush1.msra.mxu0 0.0
        %662 = vmatprep.subr.mxu0 0.0
        %663 = vmatpush1.msra.mxu0 0.0
        %664 = vmatprep.subr.mxu0 0.0
        %665 = vmatpush1.msra.mxu0 0.0
        %666 = vmatprep.subr.mxu0 0.0
        %667 = vmatpush1.msra.mxu0 0.0
        %668 = vmatprep.subr.mxu0 0.0
        %669 = vmatpush1.msra.mxu0 0.0
        %670 = vmatprep.subr.mxu0 0.0
        %671 = vmatpush1.msra.mxu0 0.0
        %672 = vmatprep.subr.mxu0 0.0
        %673 = vmatpush1.msra.mxu0 0.0
        %674 = vmatprep.subr.mxu0 0.0
        %675 = vmatpush1.msra.mxu0 0.0
        %676 = vmatprep.subr.mxu0 0.0
        %677 = vmatpush1.msra.mxu0 0.0
        %678 = vmatprep.subr.mxu0 0.0
        %679 = vmatpush1.msra.mxu0 0.0
        %680 = vmatprep.subr.mxu0 0.0
        %681 = vmatpush1.msra.mxu0 0.0
        %682 = vmatprep.subr.mxu0 0.0
        %683 = vmatpush1.msra.mxu0 0.0
        %684 = vmatprep.subr.mxu0 0.0
        %685 = vmatpush1.msra.mxu0 0.0
        %686 = vmatprep.subr.mxu0 0.0
        %687 = vmatpush1.msra.mxu0 0.0
        %688 = vmatprep.subr.mxu0 0.0
        %689 = vmatpush1.msra.mxu0 0.0
        %690 = vmatprep.subr.mxu0 0.0
        %691 = vmatpush1.msra.mxu0 0.0
        %692 = vmatprep.mubr.f32.mxu0 0.0
        %693 = vmatmul.mubr.f32.gmra.mrb[0].mxu0 %v626
        %v694 = vpop.f32.mrb[0].mxu0
        %v695 = vadd.f32 0.0, %v694
        %v696 = vpop.f32.mrb[0].mxu0
        %697 = vdwg.mxu0
        %v698 = vrcp.pop %v620
        %v699 = vmul.f32 %v695, %v698
        %v700 = vld [vmem:[%s2 + $0x10] sm:$0xff]
        %v701 = vld [vmem:[%s2 + $0x18] sm:$0xff]
        %v702 = vld [vmem:[#allocation3] sm:$0xff]
        %v704 = vsel %vm293, %v699, 0
        %706 = vmatprep.subr.mxu0 0.0
        %707 = vmatpush1.msra.mxu0 %v700
        %708 = vmatprep.subr.mxu0 0.0
        %709 = vmatpush1.msra.mxu0 %v701
        %710 = vmatprep.subr.mxu0 0.0
        %711 = vmatpush1.msra.mxu0 0.0
        %712 = vmatprep.subr.mxu0 0.0
        %713 = vmatpush1.msra.mxu0 0.0
        %714 = vmatprep.subr.mxu0 0.0
        %715 = vmatpush1.msra.mxu0 0.0
        %716 = vmatprep.subr.mxu0 0.0
        %717 = vmatpush1.msra.mxu0 0.0
        %718 = vmatprep.subr.mxu0 0.0
        %719 = vmatpush1.msra.mxu0 0.0
        %720 = vmatprep.subr.mxu0 0.0
        %721 = vmatpush1.msra.mxu0 0.0
        %722 = vmatprep.subr.mxu0 0.0
        %723 = vmatpush1.msra.mxu0 0.0
        %724 = vmatprep.subr.mxu0 0.0
        %725 = vmatpush1.msra.mxu0 0.0
        %726 = vmatprep.subr.mxu0 0.0
        %727 = vmatpush1.msra.mxu0 0.0
        %728 = vmatprep.subr.mxu0 0.0
        %729 = vmatpush1.msra.mxu0 0.0
        %730 = vmatprep.subr.mxu0 0.0
        %731 = vmatpush1.msra.mxu0 0.0
        %732 = vmatprep.subr.mxu0 0.0
        %733 = vmatpush1.msra.mxu0 0.0
        %734 = vmatprep.subr.mxu0 0.0
        %735 = vmatpush1.msra.mxu0 0.0
        %736 = vmatprep.subr.mxu0 0.0
        %737 = vmatpush1.msra.mxu0 0.0
        %738 = vmatprep.subr.mxu0 0.0
        %739 = vmatpush1.msra.mxu0 0.0
        %740 = vmatprep.subr.mxu0 0.0
        %741 = vmatpush1.msra.mxu0 0.0
        %742 = vmatprep.subr.mxu0 0.0
        %743 = vmatpush1.msra.mxu0 0.0
        %744 = vmatprep.subr.mxu0 0.0
        %745 = vmatpush1.msra.mxu0 0.0
        %746 = vmatprep.subr.mxu0 0.0
        %747 = vmatpush1.msra.mxu0 0.0
        %748 = vmatprep.subr.mxu0 0.0
        %749 = vmatpush1.msra.mxu0 0.0
        %750 = vmatprep.subr.mxu0 0.0
        %751 = vmatpush1.msra.mxu0 0.0
        %752 = vmatprep.subr.mxu0 0.0
        %753 = vmatpush1.msra.mxu0 0.0
        %754 = vmatprep.subr.mxu0 0.0
        %755 = vmatpush1.msra.mxu0 0.0
        %756 = vmatprep.subr.mxu0 0.0
        %757 = vmatpush1.msra.mxu0 0.0
        %758 = vmatprep.subr.mxu0 0.0
        %759 = vmatpush1.msra.mxu0 0.0
        %760 = vmatprep.subr.mxu0 0.0
        %761 = vmatpush1.msra.mxu0 0.0
        %762 = vmatprep.subr.mxu0 0.0
        %763 = vmatpush1.msra.mxu0 0.0
        %764 = vmatprep.subr.mxu0 0.0
        %765 = vmatpush1.msra.mxu0 0.0
        %766 = vmatprep.subr.mxu0 0.0
        %767 = vmatpush1.msra.mxu0 0.0
        %768 = vmatprep.subr.mxu0 0.0
        %769 = vmatpush1.msra.mxu0 0.0
        %770 = vmatprep.mubr.f32.mxu0 0.0
        %771 = vmatmul.mubr.f32.gmra.mrb[0].mxu0 %v704
        %v772 = vpop.f32.mrb[0].mxu0
        %v773 = vadd.f32 0.0, %v772
        %v774 = vpop.f32.mrb[0].mxu0
        %775 = vdwg.mxu0
        %v776 = vadd.f32 %v702, %v773
        %777 = vst.msk [vmem:[#allocation3] sm:$0xff] %vm202, %v776
        %v778 = vld [vmem:[#allocation2] sm:$0xff]
        %v779 = vld [vmem:[#allocation2 + $0x8] sm:$0xff]
        %781 = vrot.lane.b32.xlu0 %v778, 96
        %v782 = vpop.permute.xlu0 %781
        %783 = vrot.lane.b32.xlu0 %v778, 32
        %v784 = vpop.permute.xlu0 %783
        %v785 = vsel %vm293, %v782, 0
        %v787 = vsel %vm293, %v784, 0
        %789 = vmatprep.subr.mxu0 0.0
        %790 = vmatpush1.xpose.msra.mxu0 %v787
        %791 = vmatprep.subr.mxu0 0.0
        %792 = vmatpush1.xpose.msra.mxu0 0.0
        %793 = vmatprep.subr.mxu0 0.0
        %794 = vmatpush1.xpose.msra.mxu0 0.0
        %795 = vmatprep.subr.mxu0 0.0
        %796 = vmatpush1.xpose.msra.mxu0 0.0
        %797 = vmatprep.subr.mxu0 0.0
        %798 = vmatpush1.xpose.msra.mxu0 0.0
        %799 = vmatprep.subr.mxu0 0.0
        %800 = vmatpush1.xpose.msra.mxu0 0.0
        %801 = vmatprep.subr.mxu0 0.0
        %802 = vmatpush1.xpose.msra.mxu0 0.0
        %803 = vmatprep.subr.mxu0 0.0
        %804 = vmatpush1.xpose.msra.mxu0 0.0
        %805 = vmatprep.subr.mxu0 0.0
        %806 = vmatpush1.xpose.msra.mxu0 0.0
        %807 = vmatprep.subr.mxu0 0.0
        %808 = vmatpush1.xpose.msra.mxu0 0.0
        %809 = vmatprep.subr.mxu0 0.0
        %810 = vmatpush1.xpose.msra.mxu0 0.0
        %811 = vmatprep.subr.mxu0 0.0
        %812 = vmatpush1.xpose.msra.mxu0 0.0
        %813 = vmatprep.subr.mxu0 0.0
        %814 = vmatpush1.xpose.msra.mxu0 0.0
        %815 = vmatprep.subr.mxu0 0.0
        %816 = vmatpush1.xpose.msra.mxu0 0.0
        %817 = vmatprep.subr.mxu0 0.0
        %818 = vmatpush1.xpose.msra.mxu0 0.0
        %819 = vmatprep.subr.mxu0 0.0
        %820 = vmatpush1.xpose.msra.mxu0 0.0
        %821 = vmatprep.subr.mxu0 0.0
        %822 = vmatpush1.xpose.msra.mxu0 0.0
        %823 = vmatprep.subr.mxu0 0.0
        %824 = vmatpush1.xpose.msra.mxu0 0.0
        %825 = vmatprep.subr.mxu0 0.0
        %826 = vmatpush1.xpose.msra.mxu0 0.0
        %827 = vmatprep.subr.mxu0 0.0
        %828 = vmatpush1.xpose.msra.mxu0 0.0
        %829 = vmatprep.subr.mxu0 0.0
        %830 = vmatpush1.xpose.msra.mxu0 0.0
        %831 = vmatprep.subr.mxu0 0.0
        %832 = vmatpush1.xpose.msra.mxu0 0.0
        %833 = vmatprep.subr.mxu0 0.0
        %834 = vmatpush1.xpose.msra.mxu0 0.0
        %835 = vmatprep.subr.mxu0 0.0
        %836 = vmatpush1.xpose.msra.mxu0 0.0
        %837 = vmatprep.subr.mxu0 0.0
        %838 = vmatpush1.xpose.msra.mxu0 0.0
        %839 = vmatprep.subr.mxu0 0.0
        %840 = vmatpush1.xpose.msra.mxu0 0.0
        %841 = vmatprep.subr.mxu0 0.0
        %842 = vmatpush1.xpose.msra.mxu0 0.0
        %843 = vmatprep.subr.mxu0 0.0
        %844 = vmatpush1.xpose.msra.mxu0 0.0
        %845 = vmatprep.subr.mxu0 0.0
        %846 = vmatpush1.xpose.msra.mxu0 0.0
        %847 = vmatprep.subr.mxu0 0.0
        %848 = vmatpush1.xpose.msra.mxu0 0.0
        %849 = vmatprep.subr.mxu0 0.0
        %850 = vmatpush1.xpose.msra.mxu0 0.0
        %851 = vmatprep.subr.mxu0 0.0
        %852 = vmatpush1.xpose.msra.mxu0 0.0
        %853 = vmatprep.mubr.f32.mxu0 0.0
        %854 = vmatmul.mubr.f32.gmra.mrb[0].mxu0 %v785
        %v855 = vpop.f32.mrb[0].mxu0
        %v856 = vadd.f32 0.0, %v855
        %v857 = vpop.f32.mrb[0].mxu0
        %858 = vdwg.mxu0
        %v859 = vsel %vm368, %v856, -inf
        %860 = vmax.xlane.f32.xlu0 %v859
        %v861 = vpop.xlane.xlu0 %860
        %v862 = vsub.f32 %v856, %v861
        %v863 = vmul.f32 %v862, 1.442695
        %v864 = vpow.pop %v863
        %v865 = vsel %vm368, %v864, 0.0
        %866 = vadd.xlane.f32.xlu0 %v865
        %v867 = vpop.xlane.xlu0 %866
        %869 = vrot.lane.b32.xlu0 %v779, 96
        %v870 = vpop.permute.xlu0 %869
        %v873 = vsel %vm368, %v864, 0
        %875 = vmatprep.subr.mxu0 0.0
        %876 = vmatpush1.msra.mxu0 %v870
        %877 = vmatprep.subr.mxu0 0.0
        %878 = vmatpush1.msra.mxu0 0.0
        %879 = vmatprep.subr.mxu0 0.0
        %880 = vmatpush1.msra.mxu0 0.0
        %881 = vmatprep.subr.mxu0 0.0
        %882 = vmatpush1.msra.mxu0 0.0
        %883 = vmatprep.subr.mxu0 0.0
        %884 = vmatpush1.msra.mxu0 0.0
        %885 = vmatprep.subr.mxu0 0.0
        %886 = vmatpush1.msra.mxu0 0.0
        %887 = vmatprep.subr.mxu0 0.0
        %888 = vmatpush1.msra.mxu0 0.0
        %889 = vmatprep.subr.mxu0 0.0
        %890 = vmatpush1.msra.mxu0 0.0
        %891 = vmatprep.subr.mxu0 0.0
        %892 = vmatpush1.msra.mxu0 0.0
        %893 = vmatprep.subr.mxu0 0.0
        %894 = vmatpush1.msra.mxu0 0.0
        %895 = vmatprep.subr.mxu0 0.0
        %896 = vmatpush1.msra.mxu0 0.0
        %897 = vmatprep.subr.mxu0 0.0
        %898 = vmatpush1.msra.mxu0 0.0
        %899 = vmatprep.subr.mxu0 0.0
        %900 = vmatpush1.msra.mxu0 0.0
        %901 = vmatprep.subr.mxu0 0.0
        %902 = vmatpush1.msra.mxu0 0.0
        %903 = vmatprep.subr.mxu0 0.0
        %904 = vmatpush1.msra.mxu0 0.0
        %905 = vmatprep.subr.mxu0 0.0
        %906 = vmatpush1.msra.mxu0 0.0
        %907 = vmatprep.subr.mxu0 0.0
        %908 = vmatpush1.msra.mxu0 0.0
        %909 = vmatprep.subr.mxu0 0.0
        %910 = vmatpush1.msra.mxu0 0.0
        %911 = vmatprep.subr.mxu0 0.0
        %912 = vmatpush1.msra.mxu0 0.0
        %913 = vmatprep.subr.mxu0 0.0
        %914 = vmatpush1.msra.mxu0 0.0
        %915 = vmatprep.subr.mxu0 0.0
        %916 = vmatpush1.msra.mxu0 0.0
        %917 = vmatprep.subr.mxu0 0.0
        %918 = vmatpush1.msra.mxu0 0.0
        %919 = vmatprep.subr.mxu0 0.0
        %920 = vmatpush1.msra.mxu0 0.0
        %921 = vmatprep.subr.mxu0 0.0
        %922 = vmatpush1.msra.mxu0 0.0
        %923 = vmatprep.subr.mxu0 0.0
        %924 = vmatpush1.msra.mxu0 0.0
        %925 = vmatprep.subr.mxu0 0.0
        %926 = vmatpush1.msra.mxu0 0.0
        %927 = vmatprep.subr.mxu0 0.0
        %928 = vmatpush1.msra.mxu0 0.0
        %929 = vmatprep.subr.mxu0 0.0
        %930 = vmatpush1.msra.mxu0 0.0
        %931 = vmatprep.subr.mxu0 0.0
        %932 = vmatpush1.msra.mxu0 0.0
        %933 = vmatprep.subr.mxu0 0.0
        %934 = vmatpush1.msra.mxu0 0.0
        %935 = vmatprep.subr.mxu0 0.0
        %936 = vmatpush1.msra.mxu0 0.0
        %937 = vmatprep.subr.mxu0 0.0
        %938 = vmatpush1.msra.mxu0 0.0
        %939 = vmatprep.mubr.f32.mxu0 0.0
        %940 = vmatmul.mubr.f32.gmra.mrb[0].mxu0 %v873
        %v941 = vpop.f32.mrb[0].mxu0
        %v942 = vadd.f32 0.0, %v941
        %v943 = vpop.f32.mrb[0].mxu0
        %944 = vdwg.mxu0
        %v945 = vrcp.pop %v867
        %v946 = vmul.f32 %v942, %v945
        %v947 = vld [vmem:[%s2 + $0x20] sm:$0xff]
        %v948 = vld [vmem:[%s2 + $0x28] sm:$0xff]
        %v949 = vld [vmem:[#allocation3] sm:$0xff]
        %v951 = vsel %vm293, %v946, 0
        %953 = vmatprep.subr.mxu0 0.0
        %954 = vmatpush1.msra.mxu0 %v947
        %955 = vmatprep.subr.mxu0 0.0
        %956 = vmatpush1.msra.mxu0 %v948
        %957 = vmatprep.subr.mxu0 0.0
        %958 = vmatpush1.msra.mxu0 0.0
        %959 = vmatprep.subr.mxu0 0.0
        %960 = vmatpush1.msra.mxu0 0.0
        %961 = vmatprep.subr.mxu0 0.0
        %962 = vmatpush1.msra.mxu0 0.0
        %963 = vmatprep.subr.mxu0 0.0
        %964 = vmatpush1.msra.mxu0 0.0
        %965 = vmatprep.subr.mxu0 0.0
        %966 = vmatpush1.msra.mxu0 0.0
        %967 = vmatprep.subr.mxu0 0.0
        %968 = vmatpush1.msra.mxu0 0.0
        %969 = vmatprep.subr.mxu0 0.0
        %970 = vmatpush1.msra.mxu0 0.0
        %971 = vmatprep.subr.mxu0 0.0
        %972 = vmatpush1.msra.mxu0 0.0
        %973 = vmatprep.subr.mxu0 0.0
        %974 = vmatpush1.msra.mxu0 0.0
        %975 = vmatprep.subr.mxu0 0.0
        %976 = vmatpush1.msra.mxu0 0.0
        %977 = vmatprep.subr.mxu0 0.0
        %978 = vmatpush1.msra.mxu0 0.0
        %979 = vmatprep.subr.mxu0 0.0
        %980 = vmatpush1.msra.mxu0 0.0
        %981 = vmatprep.subr.mxu0 0.0
        %982 = vmatpush1.msra.mxu0 0.0
        %983 = vmatprep.subr.mxu0 0.0
        %984 = vmatpush1.msra.mxu0 0.0
        %985 = vmatprep.subr.mxu0 0.0
        %986 = vmatpush1.msra.mxu0 0.0
        %987 = vmatprep.subr.mxu0 0.0
        %988 = vmatpush1.msra.mxu0 0.0
        %989 = vmatprep.subr.mxu0 0.0
        %990 = vmatpush1.msra.mxu0 0.0
        %991 = vmatprep.subr.mxu0 0.0
        %992 = vmatpush1.msra.mxu0 0.0
        %993 = vmatprep.subr.mxu0 0.0
        %994 = vmatpush1.msra.mxu0 0.0
        %995 = vmatprep.subr.mxu0 0.0
        %996 = vmatpush1.msra.mxu0 0.0
        %997 = vmatprep.subr.mxu0 0.0
        %998 = vmatpush1.msra.mxu0 0.0
        %999 = vmatprep.subr.mxu0 0.0
        %1000 = vmatpush1.msra.mxu0 0.0
        %1001 = vmatprep.subr.mxu0 0.0
        %1002 = vmatpush1.msra.mxu0 0.0
        %1003 = vmatprep.subr.mxu0 0.0
        %1004 = vmatpush1.msra.mxu0 0.0
        %1005 = vmatprep.subr.mxu0 0.0
        %1006 = vmatpush1.msra.mxu0 0.0
        %1007 = vmatprep.subr.mxu0 0.0
        %1008 = vmatpush1.msra.mxu0 0.0
        %1009 = vmatprep.subr.mxu0 0.0
        %1010 = vmatpush1.msra.mxu0 0.0
        %1011 = vmatprep.subr.mxu0 0.0
        %1012 = vmatpush1.msra.mxu0 0.0
        %1013 = vmatprep.subr.mxu0 0.0
        %1014 = vmatpush1.msra.mxu0 0.0
        %1015 = vmatprep.subr.mxu0 0.0
        %1016 = vmatpush1.msra.mxu0 0.0
        %1017 = vmatprep.mubr.f32.mxu0 0.0
        %1018 = vmatmul.mubr.f32.gmra.mrb[0].mxu0 %v951
        %v1019 = vpop.f32.mrb[0].mxu0
        %v1020 = vadd.f32 0.0, %v1019
        %v1021 = vpop.f32.mrb[0].mxu0
        %1022 = vdwg.mxu0
        %v1023 = vadd.f32 %v949, %v1020
        %1024 = vst.msk [vmem:[#allocation3] sm:$0xff] %vm202, %v1023
        %v1025 = vld [vmem:[#allocation2] sm:$0xff]
        %v1026 = vld [vmem:[#allocation2 + $0x8] sm:$0xff]
        %1028 = vrot.lane.b32.xlu0 %v1025, 80
        %v1029 = vpop.permute.xlu0 %1028
        %1030 = vrot.lane.b32.xlu0 %v1025, 16
        %v1031 = vpop.permute.xlu0 %1030
        %v1032 = vsel %vm293, %v1029, 0
        %v1034 = vsel %vm293, %v1031, 0
        %1036 = vmatprep.subr.mxu0 0.0
        %1037 = vmatpush1.xpose.msra.mxu0 %v1034
        %1038 = vmatprep.subr.mxu0 0.0
        %1039 = vmatpush1.xpose.msra.mxu0 0.0
        %1040 = vmatprep.subr.mxu0 0.0
        %1041 = vmatpush1.xpose.msra.mxu0 0.0
        %1042 = vmatprep.subr.mxu0 0.0
        %1043 = vmatpush1.xpose.msra.mxu0 0.0
        %1044 = vmatprep.subr.mxu0 0.0
        %1045 = vmatpush1.xpose.msra.mxu0 0.0
        %1046 = vmatprep.subr.mxu0 0.0
        %1047 = vmatpush1.xpose.msra.mxu0 0.0
        %1048 = vmatprep.subr.mxu0 0.0
        %1049 = vmatpush1.xpose.msra.mxu0 0.0
        %1050 = vmatprep.subr.mxu0 0.0
        %1051 = vmatpush1.xpose.msra.mxu0 0.0
        %1052 = vmatprep.subr.mxu0 0.0
        %1053 = vmatpush1.xpose.msra.mxu0 0.0
        %1054 = vmatprep.subr.mxu0 0.0
        %1055 = vmatpush1.xpose.msra.mxu0 0.0
        %1056 = vmatprep.subr.mxu0 0.0
        %1057 = vmatpush1.xpose.msra.mxu0 0.0
        %1058 = vmatprep.subr.mxu0 0.0
        %1059 = vmatpush1.xpose.msra.mxu0 0.0
        %1060 = vmatprep.subr.mxu0 0.0
        %1061 = vmatpush1.xpose.msra.mxu0 0.0
        %1062 = vmatprep.subr.mxu0 0.0
        %1063 = vmatpush1.xpose.msra.mxu0 0.0
        %1064 = vmatprep.subr.mxu0 0.0
        %1065 = vmatpush1.xpose.msra.mxu0 0.0
        %1066 = vmatprep.subr.mxu0 0.0
        %1067 = vmatpush1.xpose.msra.mxu0 0.0
        %1068 = vmatprep.subr.mxu0 0.0
        %1069 = vmatpush1.xpose.msra.mxu0 0.0
        %1070 = vmatprep.subr.mxu0 0.0
        %1071 = vmatpush1.xpose.msra.mxu0 0.0
        %1072 = vmatprep.subr.mxu0 0.0
        %1073 = vmatpush1.xpose.msra.mxu0 0.0
        %1074 = vmatprep.subr.mxu0 0.0
        %1075 = vmatpush1.xpose.msra.mxu0 0.0
        %1076 = vmatprep.subr.mxu0 0.0
        %1077 = vmatpush1.xpose.msra.mxu0 0.0
        %1078 = vmatprep.subr.mxu0 0.0
        %1079 = vmatpush1.xpose.msra.mxu0 0.0
        %1080 = vmatprep.subr.mxu0 0.0
        %1081 = vmatpush1.xpose.msra.mxu0 0.0
        %1082 = vmatprep.subr.mxu0 0.0
        %1083 = vmatpush1.xpose.msra.mxu0 0.0
        %1084 = vmatprep.subr.mxu0 0.0
        %1085 = vmatpush1.xpose.msra.mxu0 0.0
        %1086 = vmatprep.subr.mxu0 0.0
        %1087 = vmatpush1.xpose.msra.mxu0 0.0
        %1088 = vmatprep.subr.mxu0 0.0
        %1089 = vmatpush1.xpose.msra.mxu0 0.0
        %1090 = vmatprep.subr.mxu0 0.0
        %1091 = vmatpush1.xpose.msra.mxu0 0.0
        %1092 = vmatprep.subr.mxu0 0.0
        %1093 = vmatpush1.xpose.msra.mxu0 0.0
        %1094 = vmatprep.subr.mxu0 0.0
        %1095 = vmatpush1.xpose.msra.mxu0 0.0
        %1096 = vmatprep.subr.mxu0 0.0
        %1097 = vmatpush1.xpose.msra.mxu0 0.0
        %1098 = vmatprep.subr.mxu0 0.0
        %1099 = vmatpush1.xpose.msra.mxu0 0.0
        %1100 = vmatprep.mubr.f32.mxu0 0.0
        %1101 = vmatmul.mubr.f32.gmra.mrb[0].mxu0 %v1032
        %v1102 = vpop.f32.mrb[0].mxu0
        %v1103 = vadd.f32 0.0, %v1102
        %v1104 = vpop.f32.mrb[0].mxu0
        %1105 = vdwg.mxu0
        %v1106 = vsel %vm368, %v1103, -inf
        %1107 = vmax.xlane.f32.xlu0 %v1106
        %v1108 = vpop.xlane.xlu0 %1107
        %v1109 = vsub.f32 %v1103, %v1108
        %v1110 = vmul.f32 %v1109, 1.442695
        %v1111 = vpow.pop %v1110
        %v1112 = vsel %vm368, %v1111, 0.0
        %1113 = vadd.xlane.f32.xlu0 %v1112
        %v1114 = vpop.xlane.xlu0 %1113
        %1116 = vrot.lane.b32.xlu0 %v1026, 80
        %v1117 = vpop.permute.xlu0 %1116
        %v1120 = vsel %vm368, %v1111, 0
        %1122 = vmatprep.subr.mxu0 0.0
        %1123 = vmatpush1.msra.mxu0 %v1117
        %1124 = vmatprep.subr.mxu0 0.0
        %1125 = vmatpush1.msra.mxu0 0.0
        %1126 = vmatprep.subr.mxu0 0.0
        %1127 = vmatpush1.msra.mxu0 0.0
        %1128 = vmatprep.subr.mxu0 0.0
        %1129 = vmatpush1.msra.mxu0 0.0
        %1130 = vmatprep.subr.mxu0 0.0
        %1131 = vmatpush1.msra.mxu0 0.0
        %1132 = vmatprep.subr.mxu0 0.0
        %1133 = vmatpush1.msra.mxu0 0.0
        %1134 = vmatprep.subr.mxu0 0.0
        %1135 = vmatpush1.msra.mxu0 0.0
        %1136 = vmatprep.subr.mxu0 0.0
        %1137 = vmatpush1.msra.mxu0 0.0
        %1138 = vmatprep.subr.mxu0 0.0
        %1139 = vmatpush1.msra.mxu0 0.0
        %1140 = vmatprep.subr.mxu0 0.0
        %1141 = vmatpush1.msra.mxu0 0.0
        %1142 = vmatprep.subr.mxu0 0.0
        %1143 = vmatpush1.msra.mxu0 0.0
        %1144 = vmatprep.subr.mxu0 0.0
        %1145 = vmatpush1.msra.mxu0 0.0
        %1146 = vmatprep.subr.mxu0 0.0
        %1147 = vmatpush1.msra.mxu0 0.0
        %1148 = vmatprep.subr.mxu0 0.0
        %1149 = vmatpush1.msra.mxu0 0.0
        %1150 = vmatprep.subr.mxu0 0.0
        %1151 = vmatpush1.msra.mxu0 0.0
        %1152 = vmatprep.subr.mxu0 0.0
        %1153 = vmatpush1.msra.mxu0 0.0
        %1154 = vmatprep.subr.mxu0 0.0
        %1155 = vmatpush1.msra.mxu0 0.0
        %1156 = vmatprep.subr.mxu0 0.0
        %1157 = vmatpush1.msra.mxu0 0.0
        %1158 = vmatprep.subr.mxu0 0.0
        %1159 = vmatpush1.msra.mxu0 0.0
        %1160 = vmatprep.subr.mxu0 0.0
        %1161 = vmatpush1.msra.mxu0 0.0
        %1162 = vmatprep.subr.mxu0 0.0
        %1163 = vmatpush1.msra.mxu0 0.0
        %1164 = vmatprep.subr.mxu0 0.0
        %1165 = vmatpush1.msra.mxu0 0.0
        %1166 = vmatprep.subr.mxu0 0.0
        %1167 = vmatpush1.msra.mxu0 0.0
        %1168 = vmatprep.subr.mxu0 0.0
        %1169 = vmatpush1.msra.mxu0 0.0
        %1170 = vmatprep.subr.mxu0 0.0
        %1171 = vmatpush1.msra.mxu0 0.0
        %1172 = vmatprep.subr.mxu0 0.0
        %1173 = vmatpush1.msra.mxu0 0.0
        %1174 = vmatprep.subr.mxu0 0.0
        %1175 = vmatpush1.msra.mxu0 0.0
        %1176 = vmatprep.subr.mxu0 0.0
        %1177 = vmatpush1.msra.mxu0 0.0
        %1178 = vmatprep.subr.mxu0 0.0
        %1179 = vmatpush1.msra.mxu0 0.0
        %1180 = vmatprep.subr.mxu0 0.0
        %1181 = vmatpush1.msra.mxu0 0.0
        %1182 = vmatprep.subr.mxu0 0.0
        %1183 = vmatpush1.msra.mxu0 0.0
        %1184 = vmatprep.subr.mxu0 0.0
        %1185 = vmatpush1.msra.mxu0 0.0
        %1186 = vmatprep.mubr.f32.mxu0 0.0
        %1187 = vmatmul.mubr.f32.gmra.mrb[0].mxu0 %v1120
        %v1188 = vpop.f32.mrb[0].mxu0
        %v1189 = vadd.f32 0.0, %v1188
        %v1190 = vpop.f32.mrb[0].mxu0
        %1191 = vdwg.mxu0
        %v1192 = vrcp.pop %v1114
        %v1193 = vmul.f32 %v1189, %v1192
        %v1194 = vld [vmem:[%s2 + $0x30] sm:$0xff]
        %v1195 = vld [vmem:[%s2 + $0x38] sm:$0xff]
        %v1196 = vld [vmem:[#allocation3] sm:$0xff]
        %v1198 = vsel %vm293, %v1193, 0
        %1200 = vmatprep.subr.mxu0 0.0
        %1201 = vmatpush1.msra.mxu0 %v1194
        %1202 = vmatprep.subr.mxu0 0.0
        %1203 = vmatpush1.msra.mxu0 %v1195
        %1204 = vmatprep.subr.mxu0 0.0
        %1205 = vmatpush1.msra.mxu0 0.0
        %1206 = vmatprep.subr.mxu0 0.0
        %1207 = vmatpush1.msra.mxu0 0.0
        %1208 = vmatprep.subr.mxu0 0.0
        %1209 = vmatpush1.msra.mxu0 0.0
        %1210 = vmatprep.subr.mxu0 0.0
        %1211 = vmatpush1.msra.mxu0 0.0
        %1212 = vmatprep.subr.mxu0 0.0
        %1213 = vmatpush1.msra.mxu0 0.0
        %1214 = vmatprep.subr.mxu0 0.0
        %1215 = vmatpush1.msra.mxu0 0.0
        %1216 = vmatprep.subr.mxu0 0.0
        %1217 = vmatpush1.msra.mxu0 0.0
        %1218 = vmatprep.subr.mxu0 0.0
        %1219 = vmatpush1.msra.mxu0 0.0
        %1220 = vmatprep.subr.mxu0 0.0
        %1221 = vmatpush1.msra.mxu0 0.0
        %1222 = vmatprep.subr.mxu0 0.0
        %1223 = vmatpush1.msra.mxu0 0.0
        %1224 = vmatprep.subr.mxu0 0.0
        %1225 = vmatpush1.msra.mxu0 0.0
        %1226 = vmatprep.subr.mxu0 0.0
        %1227 = vmatpush1.msra.mxu0 0.0
        %1228 = vmatprep.subr.mxu0 0.0
        %1229 = vmatpush1.msra.mxu0 0.0
        %1230 = vmatprep.subr.mxu0 0.0
        %1231 = vmatpush1.msra.mxu0 0.0
        %1232 = vmatprep.subr.mxu0 0.0
        %1233 = vmatpush1.msra.mxu0 0.0
        %1234 = vmatprep.subr.mxu0 0.0
        %1235 = vmatpush1.msra.mxu0 0.0
        %1236 = vmatprep.subr.mxu0 0.0
        %1237 = vmatpush1.msra.mxu0 0.0
        %1238 = vmatprep.subr.mxu0 0.0
        %1239 = vmatpush1.msra.mxu0 0.0
        %1240 = vmatprep.subr.mxu0 0.0
        %1241 = vmatpush1.msra.mxu0 0.0
        %1242 = vmatprep.subr.mxu0 0.0
        %1243 = vmatpush1.msra.mxu0 0.0
        %1244 = vmatprep.subr.mxu0 0.0
        %1245 = vmatpush1.msra.mxu0 0.0
        %1246 = vmatprep.subr.mxu0 0.0
        %1247 = vmatpush1.msra.mxu0 0.0
        %1248 = vmatprep.subr.mxu0 0.0
        %1249 = vmatpush1.msra.mxu0 0.0
        %1250 = vmatprep.subr.mxu0 0.0
        %1251 = vmatpush1.msra.mxu0 0.0
        %1252 = vmatprep.subr.mxu0 0.0
        %1253 = vmatpush1.msra.mxu0 0.0
        %1254 = vmatprep.subr.mxu0 0.0
        %1255 = vmatpush1.msra.mxu0 0.0
        %1256 = vmatprep.subr.mxu0 0.0
        %1257 = vmatpush1.msra.mxu0 0.0
        %1258 = vmatprep.subr.mxu0 0.0
        %1259 = vmatpush1.msra.mxu0 0.0
        %1260 = vmatprep.subr.mxu0 0.0
        %1261 = vmatpush1.msra.mxu0 0.0
        %1262 = vmatprep.subr.mxu0 0.0
        %1263 = vmatpush1.msra.mxu0 0.0
        %1264 = vmatprep.mubr.f32.mxu0 0.0
        %1265 = vmatmul.mubr.f32.gmra.mrb[0].mxu0 %v1198
        %v1266 = vpop.f32.mrb[0].mxu0
        %v1267 = vadd.f32 0.0, %v1266
        %v1268 = vpop.f32.mrb[0].mxu0
        %1269 = vdwg.mxu0
        %v1270 = vadd.f32 %v1196, %v1267
        %1271 = vst.msk [vmem:[#allocation3] sm:$0xff] %vm202, %v1270
        %v1272 = vld [vmem:[#allocation3] sm:$0xff]
        %1273 = vst.msk [vmem:[%s188] sm:$0xff] %vm202, %v1272
        %s1274 = sand.u32 %s115, 1
        %s1275 = scalar_lea.sflag [#allocation5], %s1274
        %s1276 = sand.u32 %s115, 1
        %s1277 = smul.addr %s1276, 8
        %s1278 = scalar_lea.vmem [#allocation4], %s1277
        // Predicated region
        $region37: #{attention_forward.1} parent=35 // pred_check
          %p1279 = pneg %p125
        $region38: #{attention_forward.1} parent=35 // pred_check_branch
          %1281 = sbr.rel (%p1279) target = $region40
        $region39: #{attention_forward.1} parent=35 // pred_region
          %s1283 = ssub.s32 128, 128
          %1284 = vsyncadd %s1275, %s1283
          %s1285 = smul.addr %s18, 128
          %s1286 = scalar_lea.hbm %s4, %s1285
          %s1288 = sshll.u32 %s1278, 4
          %s1289 = int_to_ptr.vmem [resolvable:$true] %s1288
          %1291 = dma.vmem_to_hbm [thread:$0]  %s1289, 128, %s1286, %s1275
        $region40: #{attention_forward.1} parent=35 // pred_fallthru
          _
      $region36: #{attention_forward.1} parent=5 // pred_fallthru
        _
      %p1292 = scmp.le.s32.totalorder 2, %s13
      // Predicated region
      $region41: #{attention_forward.1} parent=5 // pred_check
        %p1293 = pneg %p1292
      $region42: #{attention_forward.1} parent=5 // pred_check_branch
        %1295 = sbr.rel (%p1293) target = $region44
      $region43: #{attention_forward.1} parent=5 // pred_region
        %s1296 = ssub.s32 %s13, 2
        // Predicated region
        $region45: #{attention_forward.1} parent=43 // pred_check
          %p1297 = pneg %p131
        $region46: #{attention_forward.1} parent=43 // pred_check_branch
          %1299 = sbr.rel (%p1297) target = $region48
        $region47: #{attention_forward.1} parent=43 // pred_region
          %s1300 = sand.u32 %s116, 1
          %s1301 = scalar_lea.sflag [#allocation5], %s1300
          %s1302 = sand.u32 %s116, 1
          %s1303 = smul.addr %s1302, 8
          %s1304 = scalar_lea.vmem [#allocation4], %s1303
          %1305 = dma.done %s1301, 128
        $region48: #{attention_forward.1} parent=43 // pred_fallthru
          _
      $region44: #{attention_forward.1} parent=5 // pred_fallthru
        _
    $region6: #{attention_forward.1} parent=1 // loop_footer
      %s17 = sadd.s32 1, %s13
    $region7: #{attention_forward.1} parent=1 // loop_footer_branch
      %12 = sbr.rel target = $region3
    $region8: #{attention_forward.1} parent=1 // loop_exit
      _
    %1306 = vsyncpa [#allocation5], 1
    %s1307 = scalar_lea.sflag [#allocation5], 1
    %1308 = vsyncpa %s1307, 1

</llo_original>
